<compile_context>
chip_gen: v5e
topology: v5e:2x2
jax: 0.10.0
libtpu: 0.0.40
codegen_flags: <defaults>
</compile_context>

<pallas_src>
import jax
import jax.numpy as jnp
import numpy as np
from jax.experimental import pallas as pl
from jax.experimental.pallas import tpu as pltpu

_LN_EPS = 1e-5


# -----------------------------------------------------------------------------
# Fused MLP_block kernel
# -----------------------------------------------------------------------------
def _ln_silu(h, g, beta, inv_n):
    """LayerNorm (torch default: biased var, eps=1e-5, affine) + SiLU, in f32.

    `inv_n` is 1/H_true: padded lanes of `h` are exactly 0 (zero-padded weights /
    biases) and their gamma/beta pads are 0, so sums over all lanes divided by the
    true H give the correct statistics and padded lanes come out exactly 0 again.
    """
    s1 = jnp.sum(h, axis=-1, keepdims=True)
    s2 = jnp.sum(h * h, axis=-1, keepdims=True)           # fused pass: E[x], E[x^2]
    mean = s1 * inv_n
    var = jnp.maximum(s2 * inv_n - mean * mean, 0.0)       # guard cancellation
    hn = (h - mean) * jax.lax.rsqrt(var + _LN_EPS)
    hn = hn * g + beta
    # SiLU: x * sigmoid(x); sigmoid(x) = 0.5*(tanh(x/2)+1) -> one EUP push/element.
    sig = 0.5 * (jnp.tanh(0.5 * hn) + 1.0)
    return hn * sig


def _make_mlp_kernel(n_hidden_layers, n_hidden_true, compute_dtype):
    inv_h = 1.0 / float(n_hidden_true)
    cd = compute_dtype

    def kernel(*refs):
        if n_hidden_layers > 0:
            (x_ref, w1_ref, b1_ref, g1_ref, bt1_ref,
             wh_ref, bh_ref, gh_ref, bth_ref,
             w2_ref, b2_ref, o_ref) = refs
        else:
            (x_ref, w1_ref, b1_ref, g1_ref, bt1_ref,
             w2_ref, b2_ref, o_ref) = refs

        # First layer: Linear -> LayerNorm -> SiLU (MXU in cd, f32 accumulation).
        h = jnp.dot(x_ref[...], w1_ref[...],
                    preferred_element_type=jnp.float32) + b1_ref[...]
        a = _ln_silu(h, g1_ref[...], bt1_ref[...], inv_h)          # (tm, Hp) f32

        def hidden(l, a_in):
            hh = jnp.dot(a_in.astype(cd), wh_ref[l],
                         preferred_element_type=jnp.float32) + bh_ref[l]
            # TODO(synk): training-mode Dropout(p=0.3) not applied here (inference).
            return _ln_silu(hh, gh_ref[l], bth_ref[l], inv_h)

        if n_hidden_layers >= 4:
            # fori_loop bounds live ranges for deep stacks (avoids vreg spills that a
            # static Python unroll would cause at large tm).
            a = jax.lax.fori_loop(0, n_hidden_layers, hidden, a)
        else:
            for l in range(n_hidden_layers):
                a = hidden(l, a)

        # Output layer: lane-dense (tm, Dout_pad) unmasked store.
        out = jnp.dot(a.astype(cd), w2_ref[...],
                      preferred_element_type=jnp.float32) + b2_ref[...]
        o_ref[...] = out.astype(o_ref.dtype)

    return kernel


# -----------------------------------------------------------------------------
# Wrapper
# -----------------------------------------------------------------------------
def _pad_axis(a, axis, target):
    pad = target - a.shape[axis]
    if pad <= 0:
        return a
    widths = [(0, 0)] * a.ndim
    widths[axis] = (0, pad)
    return jnp.pad(a, widths)


def _round_up(v, mult):
    return ((v + mult - 1) // mult) * mult


def _tpu_generation():
    """(tensorcores_per_chip, usable-VMEM cap in bytes) from the device kind."""
    try:
        kind = jax.devices()[0].device_kind.lower()
    except Exception:
        kind = ""
    if "v7" in kind or "7x" in kind:
        return 2, 56 << 20            # v7x: 2 TCs/chip, 64 MiB physical VMEM per TC
    return 1, 100 << 20               # v5e / v6e: 1 TC, 128 MiB physical VMEM


def _row_map(i):
    return (i, 0)


def _const2(i):
    return (0, 0)


def _const3(i):
    return (0, 0, 0)


def mlp_block_apply(x, params, *, tm=512, compute_dtype=jnp.float32,
                    return_padded=False):
    """Applies MLP_block to rows of x: (M, n_inp) -> (M, n_out)."""
    m, d_in = x.shape
    h = params["w1"].shape[1]
    d_out = params["w2"].shape[1]
    wh = params.get("wh")
    n_hl = 0 if wh is None else wh.shape[0]
    cd = compute_dtype

    # --- lane-dense padding (done once on the small weights) -------------------
    h_p = _round_up(h, 128)           # hidden dim -> full 128-lane width
    d_out_p = _round_up(d_out, 128)   # lane-dense unmasked output stores

    w1 = _pad_axis(params["w1"], 1, h_p).astype(cd)
    b1 = _pad_axis(params["b1"], 1, h_p)
    g1 = _pad_axis(params["g1"], 1, h_p)        # zero-padded gamma/beta keep padded
    bt1 = _pad_axis(params["beta1"], 1, h_p)    # lanes exactly 0 after LN+SiLU
    w2 = _pad_axis(_pad_axis(params["w2"], 0, h_p), 1, d_out_p).astype(cd)
    b2 = _pad_axis(params["b2"], 1, d_out_p)
    if n_hl > 0:
        whp = _pad_axis(_pad_axis(wh, 1, h_p), 2, h_p).astype(cd)
        bhp = _pad_axis(params["bh"], 2, h_p)
        ghp = _pad_axis(params["gh"], 2, h_p)
        bthp = _pad_axis(params["betah"], 2, h_p)

    if x.dtype != cd:
        # NOTE: callers that already store x in `compute_dtype` skip this cast pass.
        x = x.astype(cd)

    # --- row tile / grid (generation-aware) ------------------------------------
    n_cores, vmem_cap = _tpu_generation()
    tm_eff = min(tm, _round_up(m, 8))
    if n_cores > 1:
        # Keep >= n_cores grid steps so dimension_semantics=("parallel",) can shard
        # rows across both TensorCores (v7x megacore).
        tm_eff = min(tm_eff, max(8, _round_up(pl.cdiv(m, n_cores), 8)))
    tm_eff = max(8, (tm_eff // 8) * 8)

    # --- explicit VMEM budget ----------------------------------------------------
    bcd = jnp.dtype(cd).itemsize
    w_bytes = (d_in * h_p * bcd + 3 * h_p * 4
               + n_hl * (h_p * h_p * bcd + 3 * h_p * 4)
               + h_p * d_out_p * bcd + d_out_p * 4)

    def vmem_need(tm_):
        io = 2 * tm_ * d_in * bcd + 2 * tm_ * d_out_p * 4     # double-buffered x/out
        act = 4 * tm_ * h_p * 4                               # live f32 intermediates
        return int(1.3 * (2 * w_bytes + io + act))            # 2x weights: covers the
                                                              # double-buffered fallback

    while vmem_need(tm_eff) > vmem_cap and tm_eff > 64:
        tm_eff = max(64, _round_up(tm_eff // 2, 8))
    vmem_limit = max(32 << 20, min(vmem_need(tm_eff), vmem_cap))

    grid = (pl.cdiv(m, tm_eff),)

    args = [x, w1, b1, g1, bt1]
    if n_hl > 0:
        args += [whp, bhp, ghp, bthp]
    args += [w2, b2]

    def build(single_buffer_weights):
        def const_spec(shape):
            idx = _const3 if len(shape) == 3 else _const2
            if single_buffer_weights:
                # Constant blocks never change across the grid: no double-buffering.
                return pl.BlockSpec(shape, idx, pipeline_mode=pl.Buffered(1))
            return pl.BlockSpec(shape, idx)

        in_specs = [pl.BlockSpec((tm_eff, d_in), _row_map),
                    const_spec((d_in, h_p)),
                    const_spec((1, h_p)),
                    const_spec((1, h_p)),
                    const_spec((1, h_p))]
        if n_hl > 0:
            in_specs += [const_spec((n_hl, h_p, h_p)),
                         const_spec((n_hl, 1, h_p)),
                         const_spec((n_hl, 1, h_p)),
                         const_spec((n_hl, 1, h_p))]
        in_specs += [const_spec((h_p, d_out_p)), const_spec((1, d_out_p))]

        return pl.pallas_call(
            _make_mlp_kernel(n_hl, h, cd),
            out_shape=jax.ShapeDtypeStruct((m, d_out_p), jnp.float32),
            grid=grid,
            in_specs=in_specs,
            out_specs=pl.BlockSpec((tm_eff, d_out_p), _row_map),
            compiler_params=pltpu.CompilerParams(
                dimension_semantics=("parallel",),
                vmem_limit_bytes=vmem_limit),
        )

    try:
        out = jax.block_until_ready(build(True)(*args))
    except Exception:
        # Fallback: some JAX builds may reject Buffered(1); use default buffering.
        out = build(False)(*args)

    if return_padded or d_out_p == d_out:
        return out
    return out[:, :d_out]


# -----------------------------------------------------------------------------
# Parameter init (torch nn.Linear / nn.LayerNorm defaults, deterministic)
# -----------------------------------------------------------------------------
def init_mlp_params(key, n_inp, n_out, n_hidden, n_layers):
    assert n_layers >= 1
    keys = jax.random.split(key, 2 * (n_layers + 1))

    def lin_init(kw, kb, fan_in, fan_out):
        bound = 1.0 / np.sqrt(fan_in)
        w = jax.random.uniform(kw, (fan_in, fan_out), jnp.float32, -bound, bound)
        b = jax.random.uniform(kb, (1, fan_out), jnp.float32, -bound, bound)
        return w, b

    w1, b1 = lin_init(keys[0], keys[1], n_inp, n_hidden)
    params = {
        "w1": w1, "b1": b1,
        "g1": jnp.ones((1, n_hidden), jnp.float32),
        "beta1": jnp.zeros((1, n_hidden), jnp.float32),
    }
    if n_layers > 1:
        whs, bhs = [], []
        for l in range(n_layers - 1):
            w, b = lin_init(keys[2 + 2 * l], keys[3 + 2 * l], n_hidden, n_hidden)
            whs.append(w)
            bhs.append(b)
        params["wh"] = jnp.stack(whs)                                    # (L-1, H, H)
        params["bh"] = jnp.stack(bhs)                                    # (L-1, 1, H)
        params["gh"] = jnp.ones((n_layers - 1, 1, n_hidden), jnp.float32)
        params["betah"] = jnp.zeros((n_layers - 1, 1, n_hidden), jnp.float32)
    else:
        params["wh"] = params["bh"] = params["gh"] = params["betah"] = None
    w2, b2 = lin_init(keys[-2], keys[-1], n_hidden, n_out)
    params["w2"], params["b2"] = w2, b2
    return params


# -----------------------------------------------------------------------------
# Pure-JAX reference (same semantics as the PyTorch module in eval mode)
# -----------------------------------------------------------------------------
def mlp_block_ref(x, params, compute_dtype=jnp.float32):
    cd = compute_dtype

    def lin(a, w, b):
        return jnp.dot(a.astype(cd), w.astype(cd),
                       preferred_element_type=jnp.float32) + b

    def ln_silu(hh, g, beta):
        mean = hh.mean(-1, keepdims=True)
        var = ((hh - mean) ** 2).mean(-1, keepdims=True)
        hn = (hh - mean) / jnp.sqrt(var + _LN_EPS) * g + beta
        return hn * jax.nn.sigmoid(hn)

    a = ln_silu(lin(x, params["w1"], params["b1"]), params["g1"], params["beta1"])
    n_hidden_layers = 0 if params.get("wh") is None else params["wh"].shape[0]
    for l in range(n_hidden_layers):
        a = ln_silu(lin(a, params["wh"][l], params["bh"][l]),
                    params["gh"][l], params["betah"][l])
    return lin(a, params["w2"], params["b2"])


if __name__ == "__main__":
    key = jax.random.PRNGKey(0)
    k_x1, k_x2, k_p1, k_p2, k_g, k_b = jax.random.split(key, 6)

    # MLP_block(n_inp=4, n_out=32, n_hidden=32, n_layers=2), batch of 200 rows.
    n_inp, n_out, n_hidden, n_layers = 4, 32, 32, 2
    m = 200
    x = jax.random.normal(k_x1, (m, n_inp), jnp.float32)

    params = init_mlp_params(k_p1, n_inp, n_out, n_hidden, n_layers)
    # Perturb the LayerNorm affine params so the numerical check exercises them
    # (torch init is gamma=1, beta=0).
    params["g1"] = params["g1"] + 0.1 * jax.random.normal(k_g, params["g1"].shape)
    params["beta1"] = params["beta1"] + 0.1 * jax.random.normal(k_b, params["beta1"].shape)

    # 1) f32 path, small tile to exercise a multi-step grid with a ragged final block.
    out_f32 = mlp_block_apply(x, params, tm=64, compute_dtype=jnp.float32)
    jax.block_until_ready(out_f32)
    ref_f32 = mlp_block_ref(x, params)
    np.testing.assert_allclose(np.asarray(out_f32), np.asarray(ref_f32),
                               rtol=1e-2, atol=1e-2)

    # 2) bf16 MXU-operand path (f32 accumulation + f32 LN/SiLU), default large tile.
    out_bf16 = mlp_block_apply(x, params, compute_dtype=jnp.bfloat16)
    jax.block_until_ready(out_bf16)
    ref_bf16 = mlp_block_ref(x, params, compute_dtype=jnp.bfloat16)
    np.testing.assert_allclose(np.asarray(out_bf16), np.asarray(ref_bf16),
                               rtol=5e-2, atol=5e-2)

    # 3) n_layers=1 path, row count not a multiple of 8 (masked boundary rows).
    params1 = init_mlp_params(k_p2, 6, 16, 32, 1)
    x1 = jax.random.normal(k_x2, (37, 6), jnp.float32)
    out1 = mlp_block_apply(x1, params1)
    jax.block_until_ready(out1)
    np.testing.assert_allclose(np.asarray(out1),
                               np.asarray(mlp_block_ref(x1, params1)),
                               rtol=1e-2, atol=1e-2)

    print("KERNEL_OK")
</pallas_src>

<mosaic_0001>
module attributes {stable_mosaic.version = 11 : i64} {
  func.func @kernel(%arg0: i32, %arg1: memref<64x4xf32, #tpu.memory_space<vmem>>, %arg2: memref<4x128xf32, #tpu.memory_space<vmem>>, %arg3: memref<1x128xf32, #tpu.memory_space<vmem>>, %arg4: memref<1x128xf32, #tpu.memory_space<vmem>>, %arg5: memref<1x128xf32, #tpu.memory_space<vmem>>, %arg6: memref<1x128x128xf32, #tpu.memory_space<vmem>>, %arg7: memref<1x1x128xf32, #tpu.memory_space<vmem>>, %arg8: memref<1x1x128xf32, #tpu.memory_space<vmem>>, %arg9: memref<1x1x128xf32, #tpu.memory_space<vmem>>, %arg10: memref<128x128xf32, #tpu.memory_space<vmem>>, %arg11: memref<1x128xf32, #tpu.memory_space<vmem>>, %arg12: memref<64x128xf32, #tpu.memory_space<vmem>>) attributes {dimension_semantics = [#tpu.dimension_semantics<parallel>], iteration_bounds = array<i64: 4>, scalar_prefetch = 0 : i64, scratch_operands = 0 : i64, tpu.core_type = #tpu.core_type<tc>, window_params = [{transform_indices = @transform_0, window_bounds = array<i64: 64, 4>}, {pipeline_mode = #tpu.pipeline_mode<synchronous>, transform_indices = @transform_1, window_bounds = array<i64: 4, 128>}, {pipeline_mode = #tpu.pipeline_mode<synchronous>, transform_indices = @transform_2, window_bounds = array<i64: 1, 128>}, {pipeline_mode = #tpu.pipeline_mode<synchronous>, transform_indices = @transform_3, window_bounds = array<i64: 1, 128>}, {pipeline_mode = #tpu.pipeline_mode<synchronous>, transform_indices = @transform_4, window_bounds = array<i64: 1, 128>}, {pipeline_mode = #tpu.pipeline_mode<synchronous>, transform_indices = @transform_5, window_bounds = array<i64: 1, 128, 128>}, {pipeline_mode = #tpu.pipeline_mode<synchronous>, transform_indices = @transform_6, window_bounds = array<i64: 1, 1, 128>}, {pipeline_mode = #tpu.pipeline_mode<synchronous>, transform_indices = @transform_7, window_bounds = array<i64: 1, 1, 128>}, {pipeline_mode = #tpu.pipeline_mode<synchronous>, transform_indices = @transform_8, window_bounds = array<i64: 1, 1, 128>}, {pipeline_mode = #tpu.pipeline_mode<synchronous>, transform_indices = @transform_9, window_bounds = array<i64: 128, 128>}, {pipeline_mode = #tpu.pipeline_mode<synchronous>, transform_indices = @transform_10, window_bounds = array<i64: 1, 128>}, {transform_indices = @transform_11, window_bounds = array<i64: 64, 128>}]} {
    %c0 = arith.constant 0 : index
    %c0_0 = arith.constant 0 : index
    %0 = vector.load %arg1[%c0, %c0_0] : memref<64x4xf32, #tpu.memory_space<vmem>>, vector<64x4xf32>
    %c0_1 = arith.constant 0 : index
    %c0_2 = arith.constant 0 : index
    %1 = vector.load %arg2[%c0_1, %c0_2] : memref<4x128xf32, #tpu.memory_space<vmem>>, vector<4x128xf32>
    %cst = arith.constant dense<0.000000e+00> : vector<64x128xf32>
    %2 = tpu.matmul %0, %1, %cst {dimension_numbers = #tpu.dot_dimension_numbers<[1], [0], [0], [1], [0, 0, 1, 1], [], []>} : vector<64x4xf32>, vector<4x128xf32>, vector<64x128xf32> -> vector<64x128xf32>
    %c0_3 = arith.constant 0 : index
    %c0_4 = arith.constant 0 : index
    %3 = vector.load %arg3[%c0_3, %c0_4] : memref<1x128xf32, #tpu.memory_space<vmem>>, vector<1x128xf32>
    %4 = vector.broadcast %3 : vector<1x128xf32> to vector<64x128xf32>
    %5 = arith.addf %2, %4 : vector<64x128xf32>
    %c0_5 = arith.constant 0 : index
    %c0_6 = arith.constant 0 : index
    %6 = vector.load %arg4[%c0_5, %c0_6] : memref<1x128xf32, #tpu.memory_space<vmem>>, vector<1x128xf32>
    %c0_7 = arith.constant 0 : index
    %c0_8 = arith.constant 0 : index
    %7 = vector.load %arg5[%c0_7, %c0_8] : memref<1x128xf32, #tpu.memory_space<vmem>>, vector<1x128xf32>
    %cst_9 = arith.constant dense<0.000000e+00> : vector<64xf32>
    %8 = vector.multi_reduction <add>, %5, %cst_9 [1] : vector<64x128xf32> to vector<64xf32>
    %9 = vector.shape_cast %8 : vector<64xf32> to vector<64x1xf32>
    %10 = arith.mulf %5, %5 : vector<64x128xf32>
    %cst_10 = arith.constant dense<0.000000e+00> : vector<64xf32>
    %11 = vector.multi_reduction <add>, %10, %cst_10 [1] : vector<64x128xf32> to vector<64xf32>
    %12 = vector.shape_cast %11 : vector<64xf32> to vector<64x1xf32>
    %cst_11 = arith.constant 3.125000e-02 : f32
    %13 = vector.broadcast %cst_11 : f32 to vector<64x1xf32>
    %14 = arith.mulf %9, %13 : vector<64x1xf32>
    %cst_12 = arith.constant 3.125000e-02 : f32
    %15 = vector.broadcast %cst_12 : f32 to vector<64x1xf32>
    %16 = arith.mulf %12, %15 : vector<64x1xf32>
    %17 = arith.mulf %14, %14 : vector<64x1xf32>
    %18 = arith.subf %16, %17 : vector<64x1xf32>
    %cst_13 = arith.constant 0.000000e+00 : f32
    %19 = vector.broadcast %cst_13 : f32 to vector<64x1xf32>
    %20 = arith.maximumf %18, %19 : vector<64x1xf32>
    %21 = vector.broadcast %14 : vector<64x1xf32> to vector<64x128xf32>
    %22 = arith.subf %5, %21 : vector<64x128xf32>
    %cst_14 = arith.constant 9.99999974E-6 : f32
    %23 = vector.broadcast %cst_14 : f32 to vector<64x1xf32>
    %24 = arith.addf %20, %23 : vector<64x1xf32>
    %25 = math.rsqrt %24 : vector<64x1xf32>
    %26 = vector.broadcast %25 : vector<64x1xf32> to vector<64x128xf32>
    %27 = arith.mulf %22, %26 : vector<64x128xf32>
    %28 = vector.broadcast %6 : vector<1x128xf32> to vector<64x128xf32>
    %29 = arith.mulf %27, %28 : vector<64x128xf32>
    %30 = vector.broadcast %7 : vector<1x128xf32> to vector<64x128xf32>
    %31 = arith.addf %29, %30 : vector<64x128xf32>
    %cst_15 = arith.constant 5.000000e-01 : f32
    %32 = vector.broadcast %cst_15 : f32 to vector<64x128xf32>
    %33 = arith.mulf %32, %31 : vector<64x128xf32>
    %34 = math.tanh %33 : vector<64x128xf32>
    %cst_16 = arith.constant 1.000000e+00 : f32
    %35 = vector.broadcast %cst_16 : f32 to vector<64x128xf32>
    %36 = arith.addf %34, %35 : vector<64x128xf32>
    %cst_17 = arith.constant 5.000000e-01 : f32
    %37 = vector.broadcast %cst_17 : f32 to vector<64x128xf32>
    %38 = arith.mulf %37, %36 : vector<64x128xf32>
    %39 = arith.mulf %31, %38 : vector<64x128xf32>
    %c0_18 = arith.constant 0 : index
    %c0_19 = arith.constant 0 : index
    %c0_20 = arith.constant 0 : index
    %40 = vector.load %arg6[%c0_18, %c0_19, %c0_20] : memref<1x128x128xf32, #tpu.memory_space<vmem>>, vector<1x128x128xf32>
    %41 = vector.shape_cast %40 : vector<1x128x128xf32> to vector<128x128xf32>
    %cst_21 = arith.constant dense<0.000000e+00> : vector<64x128xf32>
    %42 = tpu.matmul %39, %41, %cst_21 {dimension_numbers = #tpu.dot_dimension_numbers<[1], [0], [0], [1], [0, 0, 1, 1], [], []>} : vector<64x128xf32>, vector<128x128xf32>, vector<64x128xf32> -> vector<64x128xf32>
    %c0_22 = arith.constant 0 : index
    %c0_23 = arith.constant 0 : index
    %c0_24 = arith.constant 0 : index
    %43 = vector.load %arg7[%c0_22, %c0_23, %c0_24] : memref<1x1x128xf32, #tpu.memory_space<vmem>>, vector<1x1x128xf32>
    %44 = vector.shape_cast %43 : vector<1x1x128xf32> to vector<1x128xf32>
    %45 = vector.broadcast %44 : vector<1x128xf32> to vector<64x128xf32>
    %46 = arith.addf %42, %45 : vector<64x128xf32>
    %c0_25 = arith.constant 0 : index
    %c0_26 = arith.constant 0 : index
    %c0_27 = arith.constant 0 : index
    %47 = vector.load %arg8[%c0_25, %c0_26, %c0_27] : memref<1x1x128xf32, #tpu.memory_space<vmem>>, vector<1x1x128xf32>
    %48 = vector.shape_cast %47 : vector<1x1x128xf32> to vector<1x128xf32>
    %c0_28 = arith.constant 0 : index
    %c0_29 = arith.constant 0 : index
    %c0_30 = arith.constant 0 : index
    %49 = vector.load %arg9[%c0_28, %c0_29, %c0_30] : memref<1x1x128xf32, #tpu.memory_space<vmem>>, vector<1x1x128xf32>
    %50 = vector.shape_cast %49 : vector<1x1x128xf32> to vector<1x128xf32>
    %cst_31 = arith.constant dense<0.000000e+00> : vector<64xf32>
    %51 = vector.multi_reduction <add>, %46, %cst_31 [1] : vector<64x128xf32> to vector<64xf32>
    %52 = vector.shape_cast %51 : vector<64xf32> to vector<64x1xf32>
    %53 = arith.mulf %46, %46 : vector<64x128xf32>
    %cst_32 = arith.constant dense<0.000000e+00> : vector<64xf32>
    %54 = vector.multi_reduction <add>, %53, %cst_32 [1] : vector<64x128xf32> to vector<64xf32>
    %55 = vector.shape_cast %54 : vector<64xf32> to vector<64x1xf32>
    %cst_33 = arith.constant 3.125000e-02 : f32
    %56 = vector.broadcast %cst_33 : f32 to vector<64x1xf32>
    %57 = arith.mulf %52, %56 : vector<64x1xf32>
    %cst_34 = arith.constant 3.125000e-02 : f32
    %58 = vector.broadcast %cst_34 : f32 to vector<64x1xf32>
    %59 = arith.mulf %55, %58 : vector<64x1xf32>
    %60 = arith.mulf %57, %57 : vector<64x1xf32>
    %61 = arith.subf %59, %60 : vector<64x1xf32>
    %cst_35 = arith.constant 0.000000e+00 : f32
    %62 = vector.broadcast %cst_35 : f32 to vector<64x1xf32>
    %63 = arith.maximumf %61, %62 : vector<64x1xf32>
    %64 = vector.broadcast %57 : vector<64x1xf32> to vector<64x128xf32>
    %65 = arith.subf %46, %64 : vector<64x128xf32>
    %cst_36 = arith.constant 9.99999974E-6 : f32
    %66 = vector.broadcast %cst_36 : f32 to vector<64x1xf32>
    %67 = arith.addf %63, %66 : vector<64x1xf32>
    %68 = math.rsqrt %67 : vector<64x1xf32>
    %69 = vector.broadcast %68 : vector<64x1xf32> to vector<64x128xf32>
    %70 = arith.mulf %65, %69 : vector<64x128xf32>
    %71 = vector.broadcast %48 : vector<1x128xf32> to vector<64x128xf32>
    %72 = arith.mulf %70, %71 : vector<64x128xf32>
    %73 = vector.broadcast %50 : vector<1x128xf32> to vector<64x128xf32>
    %74 = arith.addf %72, %73 : vector<64x128xf32>
    %cst_37 = arith.constant 5.000000e-01 : f32
    %75 = vector.broadcast %cst_37 : f32 to vector<64x128xf32>
    %76 = arith.mulf %75, %74 : vector<64x128xf32>
    %77 = math.tanh %76 : vector<64x128xf32>
    %cst_38 = arith.constant 1.000000e+00 : f32
    %78 = vector.broadcast %cst_38 : f32 to vector<64x128xf32>
    %79 = arith.addf %77, %78 : vector<64x128xf32>
    %cst_39 = arith.constant 5.000000e-01 : f32
    %80 = vector.broadcast %cst_39 : f32 to vector<64x128xf32>
    %81 = arith.mulf %80, %79 : vector<64x128xf32>
    %82 = arith.mulf %74, %81 : vector<64x128xf32>
    %c0_40 = arith.constant 0 : index
    %c0_41 = arith.constant 0 : index
    %83 = vector.load %arg10[%c0_40, %c0_41] : memref<128x128xf32, #tpu.memory_space<vmem>>, vector<128x128xf32>
    %cst_42 = arith.constant dense<0.000000e+00> : vector<64x128xf32>
    %84 = tpu.matmul %82, %83, %cst_42 {dimension_numbers = #tpu.dot_dimension_numbers<[1], [0], [0], [1], [0, 0, 1, 1], [], []>} : vector<64x128xf32>, vector<128x128xf32>, vector<64x128xf32> -> vector<64x128xf32>
    %c0_43 = arith.constant 0 : index
    %c0_44 = arith.constant 0 : index
    %85 = vector.load %arg11[%c0_43, %c0_44] : memref<1x128xf32, #tpu.memory_space<vmem>>, vector<1x128xf32>
    %86 = vector.broadcast %85 : vector<1x128xf32> to vector<64x128xf32>
    %87 = arith.addf %84, %86 : vector<64x128xf32>
    %c0_45 = arith.constant 0 : index
    %c0_46 = arith.constant 0 : index
    %88 = vector.load %arg12[%c0_45, %c0_46] : memref<64x128xf32, #tpu.memory_space<vmem>>, vector<64x128xf32>
    tpu.vector_store %arg12[%c0_45, %c0_46], %87 {strides = array<i32>} : memref<64x128xf32, #tpu.memory_space<vmem>>, vector<64x128xf32>,
    return
  }
  func.func @transform_0(%arg0: i32) -> (i32, i32) {
    %c0_i32 = arith.constant 0 : i32
    %c0_i32_0 = arith.constant 0 : i32
    return %arg0, %c0_i32 : i32, i32
  }
  func.func @transform_1(%arg0: i32) -> (i32, i32) {
    %c0_i32 = arith.constant 0 : i32
    %c0_i32_0 = arith.constant 0 : i32
    %c0_i32_1 = arith.constant 0 : i32
    return %c0_i32, %c0_i32_0 : i32, i32
  }
  func.func @transform_2(%arg0: i32) -> (i32, i32) {
    %c0_i32 = arith.constant 0 : i32
    %c0_i32_0 = arith.constant 0 : i32
    %c0_i32_1 = arith.constant 0 : i32
    return %c0_i32, %c0_i32_0 : i32, i32
  }
  func.func @transform_3(%arg0: i32) -> (i32, i32) {
    %c0_i32 = arith.constant 0 : i32
    %c0_i32_0 = arith.constant 0 : i32
    %c0_i32_1 = arith.constant 0 : i32
    return %c0_i32, %c0_i32_0 : i32, i32
  }
  func.func @transform_4(%arg0: i32) -> (i32, i32) {
    %c0_i32 = arith.constant 0 : i32
    %c0_i32_0 = arith.constant 0 : i32
    %c0_i32_1 = arith.constant 0 : i32
    return %c0_i32, %c0_i32_0 : i32, i32
  }
  func.func @transform_5(%arg0: i32) -> (i32, i32, i32) {
    %c0_i32 = arith.constant 0 : i32
    %c0_i32_0 = arith.constant 0 : i32
    %c0_i32_1 = arith.constant 0 : i32
    %c0_i32_2 = arith.constant 0 : i32
    return %c0_i32, %c0_i32_0, %c0_i32_1 : i32, i32, i32
  }
  func.func @transform_6(%arg0: i32) -> (i32, i32, i32) {
    %c0_i32 = arith.constant 0 : i32
    %c0_i32_0 = arith.constant 0 : i32
    %c0_i32_1 = arith.constant 0 : i32
    %c0_i32_2 = arith.constant 0 : i32
    return %c0_i32, %c0_i32_0, %c0_i32_1 : i32, i32, i32
  }
  func.func @transform_7(%arg0: i32) -> (i32, i32, i32) {
    %c0_i32 = arith.constant 0 : i32
    %c0_i32_0 = arith.constant 0 : i32
    %c0_i32_1 = arith.constant 0 : i32
    %c0_i32_2 = arith.constant 0 : i32
    return %c0_i32, %c0_i32_0, %c0_i32_1 : i32, i32, i32
  }
  func.func @transform_8(%arg0: i32) -> (i32, i32, i32) {
    %c0_i32 = arith.constant 0 : i32
    %c0_i32_0 = arith.constant 0 : i32
    %c0_i32_1 = arith.constant 0 : i32
    %c0_i32_2 = arith.constant 0 : i32
    return %c0_i32, %c0_i32_0, %c0_i32_1 : i32, i32, i32
  }
  func.func @transform_9(%arg0: i32) -> (i32, i32) {
    %c0_i32 = arith.constant 0 : i32
    %c0_i32_0 = arith.constant 0 : i32
    %c0_i32_1 = arith.constant 0 : i32
    return %c0_i32, %c0_i32_0 : i32, i32
  }
  func.func @transform_10(%arg0: i32) -> (i32, i32) {
    %c0_i32 = arith.constant 0 : i32
    %c0_i32_0 = arith.constant 0 : i32
    %c0_i32_1 = arith.constant 0 : i32
    return %c0_i32, %c0_i32_0 : i32, i32
  }
  func.func @transform_11(%arg0: i32) -> (i32, i32) {
    %c0_i32 = arith.constant 0 : i32
    %c0_i32_0 = arith.constant 0 : i32
    return %arg0, %c0_i32 : i32, i32
  }
}

module attributes {stable_mosaic.version = 11 : i64} {
  func.func @kernel(%arg0: i32, %arg1: memref<64x4xf32, #tpu.memory_space<vmem>>, %arg2: memref<4x128xf32, #tpu.memory_space<vmem>>, %arg3: memref<1x128xf32, #tpu.memory_space<vmem>>, %arg4: memref<1x128xf32, #tpu.memory_space<vmem>>, %arg5: memref<1x128xf32, #tpu.memory_space<vmem>>, %arg6: memref<1x128x128xf32, #tpu.memory_space<vmem>>, %arg7: memref<1x1x128xf32, #tpu.memory_space<vmem>>, %arg8: memref<1x1x128xf32, #tpu.memory_space<vmem>>, %arg9: memref<1x1x128xf32, #tpu.memory_space<vmem>>, %arg10: memref<128x128xf32, #tpu.memory_space<vmem>>, %arg11: memref<1x128xf32, #tpu.memory_space<vmem>>, %arg12: memref<64x128xf32, #tpu.memory_space<vmem>>) attributes {dimension_semantics = [#tpu.dimension_semantics<parallel>], iteration_bounds = array<i64: 4>, scalar_prefetch = 0 : i64, scratch_operands = 0 : i64, tpu.core_type = #tpu.core_type<tc>, window_params = [{transform_indices = @transform_0, window_bounds = array<i64: 64, 4>}, {pipeline_mode = #tpu.pipeline_mode<synchronous>, transform_indices = @transform_1, window_bounds = array<i64: 4, 128>}, {pipeline_mode = #tpu.pipeline_mode<synchronous>, transform_indices = @transform_2, window_bounds = array<i64: 1, 128>}, {pipeline_mode = #tpu.pipeline_mode<synchronous>, transform_indices = @transform_3, window_bounds = array<i64: 1, 128>}, {pipeline_mode = #tpu.pipeline_mode<synchronous>, transform_indices = @transform_4, window_bounds = array<i64: 1, 128>}, {pipeline_mode = #tpu.pipeline_mode<synchronous>, transform_indices = @transform_5, window_bounds = array<i64: 1, 128, 128>}, {pipeline_mode = #tpu.pipeline_mode<synchronous>, transform_indices = @transform_6, window_bounds = array<i64: 1, 1, 128>}, {pipeline_mode = #tpu.pipeline_mode<synchronous>, transform_indices = @transform_7, window_bounds = array<i64: 1, 1, 128>}, {pipeline_mode = #tpu.pipeline_mode<synchronous>, transform_indices = @transform_8, window_bounds = array<i64: 1, 1, 128>}, {pipeline_mode = #tpu.pipeline_mode<synchronous>, transform_indices = @transform_9, window_bounds = array<i64: 128, 128>}, {pipeline_mode = #tpu.pipeline_mode<synchronous>, transform_indices = @transform_10, window_bounds = array<i64: 1, 128>}, {transform_indices = @transform_11, window_bounds = array<i64: 64, 128>}]} {
    %c0 = arith.constant 0 : index
    %c0_0 = arith.constant 0 : index
    %0 = vector.load %arg1[%c0, %c0_0] : memref<64x4xf32, #tpu.memory_space<vmem>>, vector<64x4xf32>
    %c0_1 = arith.constant 0 : index
    %c0_2 = arith.constant 0 : index
    %1 = vector.load %arg2[%c0_1, %c0_2] : memref<4x128xf32, #tpu.memory_space<vmem>>, vector<4x128xf32>
    %cst = arith.constant dense<0.000000e+00> : vector<64x128xf32>
    %2 = tpu.matmul %0, %1, %cst {dimension_numbers = #tpu.dot_dimension_numbers<[1], [0], [0], [1], [0, 0, 1, 1], [], []>} : vector<64x4xf32>, vector<4x128xf32>, vector<64x128xf32> -> vector<64x128xf32>
    %c0_3 = arith.constant 0 : index
    %c0_4 = arith.constant 0 : index
    %3 = vector.load %arg3[%c0_3, %c0_4] : memref<1x128xf32, #tpu.memory_space<vmem>>, vector<1x128xf32>
    %4 = vector.broadcast %3 : vector<1x128xf32> to vector<64x128xf32>
    %5 = arith.addf %2, %4 : vector<64x128xf32>
    %c0_5 = arith.constant 0 : index
    %c0_6 = arith.constant 0 : index
    %6 = vector.load %arg4[%c0_5, %c0_6] : memref<1x128xf32, #tpu.memory_space<vmem>>, vector<1x128xf32>
    %c0_7 = arith.constant 0 : index
    %c0_8 = arith.constant 0 : index
    %7 = vector.load %arg5[%c0_7, %c0_8] : memref<1x128xf32, #tpu.memory_space<vmem>>, vector<1x128xf32>
    %cst_9 = arith.constant dense<0.000000e+00> : vector<64xf32>
    %8 = vector.multi_reduction <add>, %5, %cst_9 [1] : vector<64x128xf32> to vector<64xf32>
    %9 = vector.shape_cast %8 : vector<64xf32> to vector<64x1xf32>
    %10 = arith.mulf %5, %5 : vector<64x128xf32>
    %cst_10 = arith.constant dense<0.000000e+00> : vector<64xf32>
    %11 = vector.multi_reduction <add>, %10, %cst_10 [1] : vector<64x128xf32> to vector<64xf32>
    %12 = vector.shape_cast %11 : vector<64xf32> to vector<64x1xf32>
    %cst_11 = arith.constant 3.125000e-02 : f32
    %13 = vector.broadcast %cst_11 : f32 to vector<64x1xf32>
    %14 = arith.mulf %9, %13 : vector<64x1xf32>
    %cst_12 = arith.constant 3.125000e-02 : f32
    %15 = vector.broadcast %cst_12 : f32 to vector<64x1xf32>
    %16 = arith.mulf %12, %15 : vector<64x1xf32>
    %17 = arith.mulf %14, %14 : vector<64x1xf32>
    %18 = arith.subf %16, %17 : vector<64x1xf32>
    %cst_13 = arith.constant 0.000000e+00 : f32
    %19 = vector.broadcast %cst_13 : f32 to vector<64x1xf32>
    %20 = arith.maximumf %18, %19 : vector<64x1xf32>
    %21 = vector.broadcast %14 : vector<64x1xf32> to vector<64x128xf32>
    %22 = arith.subf %5, %21 : vector<64x128xf32>
    %cst_14 = arith.constant 9.99999974E-6 : f32
    %23 = vector.broadcast %cst_14 : f32 to vector<64x1xf32>
    %24 = arith.addf %20, %23 : vector<64x1xf32>
    %25 = math.rsqrt %24 : vector<64x1xf32>
    %26 = vector.broadcast %25 : vector<64x1xf32> to vector<64x128xf32>
    %27 = arith.mulf %22, %26 : vector<64x128xf32>
    %28 = vector.broadcast %6 : vector<1x128xf32> to vector<64x128xf32>
    %29 = arith.mulf %27, %28 : vector<64x128xf32>
    %30 = vector.broadcast %7 : vector<1x128xf32> to vector<64x128xf32>
    %31 = arith.addf %29, %30 : vector<64x128xf32>
    %cst_15 = arith.constant 5.000000e-01 : f32
    %32 = vector.broadcast %cst_15 : f32 to vector<64x128xf32>
    %33 = arith.mulf %32, %31 : vector<64x128xf32>
    %34 = math.tanh %33 : vector<64x128xf32>
    %cst_16 = arith.constant 1.000000e+00 : f32
    %35 = vector.broadcast %cst_16 : f32 to vector<64x128xf32>
    %36 = arith.addf %34, %35 : vector<64x128xf32>
    %cst_17 = arith.constant 5.000000e-01 : f32
    %37 = vector.broadcast %cst_17 : f32 to vector<64x128xf32>
    %38 = arith.mulf %37, %36 : vector<64x128xf32>
    %39 = arith.mulf %31, %38 : vector<64x128xf32>
    %c0_18 = arith.constant 0 : index
    %c0_19 = arith.constant 0 : index
    %c0_20 = arith.constant 0 : index
    %40 = vector.load %arg6[%c0_18, %c0_19, %c0_20] : memref<1x128x128xf32, #tpu.memory_space<vmem>>, vector<1x128x128xf32>
    %41 = vector.shape_cast %40 : vector<1x128x128xf32> to vector<128x128xf32>
    %cst_21 = arith.constant dense<0.000000e+00> : vector<64x128xf32>
    %42 = tpu.matmul %39, %41, %cst_21 {dimension_numbers = #tpu.dot_dimension_numbers<[1], [0], [0], [1], [0, 0, 1, 1], [], []>} : vector<64x128xf32>, vector<128x128xf32>, vector<64x128xf32> -> vector<64x128xf32>
    %c0_22 = arith.constant 0 : index
    %c0_23 = arith.constant 0 : index
    %c0_24 = arith.constant 0 : index
    %43 = vector.load %arg7[%c0_22, %c0_23, %c0_24] : memref<1x1x128xf32, #tpu.memory_space<vmem>>, vector<1x1x128xf32>
    %44 = vector.shape_cast %43 : vector<1x1x128xf32> to vector<1x128xf32>
    %45 = vector.broadcast %44 : vector<1x128xf32> to vector<64x128xf32>
    %46 = arith.addf %42, %45 : vector<64x128xf32>
    %c0_25 = arith.constant 0 : index
    %c0_26 = arith.constant 0 : index
    %c0_27 = arith.constant 0 : index
    %47 = vector.load %arg8[%c0_25, %c0_26, %c0_27] : memref<1x1x128xf32, #tpu.memory_space<vmem>>, vector<1x1x128xf32>
    %48 = vector.shape_cast %47 : vector<1x1x128xf32> to vector<1x128xf32>
    %c0_28 = arith.constant 0 : index
    %c0_29 = arith.constant 0 : index
    %c0_30 = arith.constant 0 : index
    %49 = vector.load %arg9[%c0_28, %c0_29, %c0_30] : memref<1x1x128xf32, #tpu.memory_space<vmem>>, vector<1x1x128xf32>
    %50 = vector.shape_cast %49 : vector<1x1x128xf32> to vector<1x128xf32>
    %cst_31 = arith.constant dense<0.000000e+00> : vector<64xf32>
    %51 = vector.multi_reduction <add>, %46, %cst_31 [1] : vector<64x128xf32> to vector<64xf32>
    %52 = vector.shape_cast %51 : vector<64xf32> to vector<64x1xf32>
    %53 = arith.mulf %46, %46 : vector<64x128xf32>
    %cst_32 = arith.constant dense<0.000000e+00> : vector<64xf32>
    %54 = vector.multi_reduction <add>, %53, %cst_32 [1] : vector<64x128xf32> to vector<64xf32>
    %55 = vector.shape_cast %54 : vector<64xf32> to vector<64x1xf32>
    %cst_33 = arith.constant 3.125000e-02 : f32
    %56 = vector.broadcast %cst_33 : f32 to vector<64x1xf32>
    %57 = arith.mulf %52, %56 : vector<64x1xf32>
    %cst_34 = arith.constant 3.125000e-02 : f32
    %58 = vector.broadcast %cst_34 : f32 to vector<64x1xf32>
    %59 = arith.mulf %55, %58 : vector<64x1xf32>
    %60 = arith.mulf %57, %57 : vector<64x1xf32>
    %61 = arith.subf %59, %60 : vector<64x1xf32>
    %cst_35 = arith.constant 0.000000e+00 : f32
    %62 = vector.broadcast %cst_35 : f32 to vector<64x1xf32>
    %63 = arith.maximumf %61, %62 : vector<64x1xf32>
    %64 = vector.broadcast %57 : vector<64x1xf32> to vector<64x128xf32>
    %65 = arith.subf %46, %64 : vector<64x128xf32>
    %cst_36 = arith.constant 9.99999974E-6 : f32
    %66 = vector.broadcast %cst_36 : f32 to vector<64x1xf32>
    %67 = arith.addf %63, %66 : vector<64x1xf32>
    %68 = math.rsqrt %67 : vector<64x1xf32>
    %69 = vector.broadcast %68 : vector<64x1xf32> to vector<64x128xf32>
    %70 = arith.mulf %65, %69 : vector<64x128xf32>
    %71 = vector.broadcast %48 : vector<1x128xf32> to vector<64x128xf32>
    %72 = arith.mulf %70, %71 : vector<64x128xf32>
    %73 = vector.broadcast %50 : vector<1x128xf32> to vector<64x128xf32>
    %74 = arith.addf %72, %73 : vector<64x128xf32>
    %cst_37 = arith.constant 5.000000e-01 : f32
    %75 = vector.broadcast %cst_37 : f32 to vector<64x128xf32>
    %76 = arith.mulf %75, %74 : vector<64x128xf32>
    %77 = math.tanh %76 : vector<64x128xf32>
    %cst_38 = arith.constant 1.000000e+00 : f32
    %78 = vector.broadcast %cst_38 : f32 to vector<64x128xf32>
    %79 = arith.addf %77, %78 : vector<64x128xf32>
    %cst_39 = arith.constant 5.000000e-01 : f32
    %80 = vector.broadcast %cst_39 : f32 to vector<64x128xf32>
    %81 = arith.mulf %80, %79 : vector<64x128xf32>
    %82 = arith.mulf %74, %81 : vector<64x128xf32>
    %c0_40 = arith.constant 0 : index
    %c0_41 = arith.constant 0 : index
    %83 = vector.load %arg10[%c0_40, %c0_41] : memref<128x128xf32, #tpu.memory_space<vmem>>, vector<128x128xf32>
    %cst_42 = arith.constant dense<0.000000e+00> : vector<64x128xf32>
    %84 = tpu.matmul %82, %83, %cst_42 {dimension_numbers = #tpu.dot_dimension_numbers<[1], [0], [0], [1], [0, 0, 1, 1], [], []>} : vector<64x128xf32>, vector<128x128xf32>, vector<64x128xf32> -> vector<64x128xf32>
    %c0_43 = arith.constant 0 : index
    %c0_44 = arith.constant 0 : index
    %85 = vector.load %arg11[%c0_43, %c0_44] : memref<1x128xf32, #tpu.memory_space<vmem>>, vector<1x128xf32>
    %86 = vector.broadcast %85 : vector<1x128xf32> to vector<64x128xf32>
    %87 = arith.addf %84, %86 : vector<64x128xf32>
    %c0_45 = arith.constant 0 : index
    %c0_46 = arith.constant 0 : index
    %88 = vector.load %arg12[%c0_45, %c0_46] : memref<64x128xf32, #tpu.memory_space<vmem>>, vector<64x128xf32>
    tpu.vector_store %arg12[%c0_45, %c0_46], %87 {strides = array<i32>} : memref<64x128xf32, #tpu.memory_space<vmem>>, vector<64x128xf32>,
    return
  }
  func.func @transform_0(%arg0: i32) -> (i32, i32) {
    %c0_i32 = arith.constant 0 : i32
    %c0_i32_0 = arith.constant 0 : i32
    return %arg0, %c0_i32 : i32, i32
  }
  func.func @transform_1(%arg0: i32) -> (i32, i32) {
    %c0_i32 = arith.constant 0 : i32
    %c0_i32_0 = arith.constant 0 : i32
    %c0_i32_1 = arith.constant 0 : i32
    return %c0_i32, %c0_i32_0 : i32, i32
  }
  func.func @transform_2(%arg0: i32) -> (i32, i32) {
    %c0_i32 = arith.constant 0 : i32
    %c0_i32_0 = arith.constant 0 : i32
    %c0_i32_1 = arith.constant 0 : i32
    return %c0_i32, %c0_i32_0 : i32, i32
  }
  func.func @transform_3(%arg0: i32) -> (i32, i32) {
    %c0_i32 = arith.constant 0 : i32
    %c0_i32_0 = arith.constant 0 : i32
    %c0_i32_1 = arith.constant 0 : i32
    return %c0_i32, %c0_i32_0 : i32, i32
  }
  func.func @transform_4(%arg0: i32) -> (i32, i32) {
    %c0_i32 = arith.constant 0 : i32
    %c0_i32_0 = arith.constant 0 : i32
    %c0_i32_1 = arith.constant 0 : i32
    return %c0_i32, %c0_i32_0 : i32, i32
  }
  func.func @transform_5(%arg0: i32) -> (i32, i32, i32) {
    %c0_i32 = arith.constant 0 : i32
    %c0_i32_0 = arith.constant 0 : i32
    %c0_i32_1 = arith.constant 0 : i32
    %c0_i32_2 = arith.constant 0 : i32
    return %c0_i32, %c0_i32_0, %c0_i32_1 : i32, i32, i32
  }
  func.func @transform_6(%arg0: i32) -> (i32, i32, i32) {
    %c0_i32 = arith.constant 0 : i32
    %c0_i32_0 = arith.constant 0 : i32
    %c0_i32_1 = arith.constant 0 : i32
    %c0_i32_2 = arith.constant 0 : i32
    return %c0_i32, %c0_i32_0, %c0_i32_1 : i32, i32, i32
  }
  func.func @transform_7(%arg0: i32) -> (i32, i32, i32) {
    %c0_i32 = arith.constant 0 : i32
    %c0_i32_0 = arith.constant 0 : i32
    %c0_i32_1 = arith.constant 0 : i32
    %c0_i32_2 = arith.constant 0 : i32
    return %c0_i32, %c0_i32_0, %c0_i32_1 : i32, i32, i32
  }
  func.func @transform_8(%arg0: i32) -> (i32, i32, i32) {
    %c0_i32 = arith.constant 0 : i32
    %c0_i32_0 = arith.constant 0 : i32
    %c0_i32_1 = arith.constant 0 : i32
    %c0_i32_2 = arith.constant 0 : i32
    return %c0_i32, %c0_i32_0, %c0_i32_1 : i32, i32, i32
  }
  func.func @transform_9(%arg0: i32) -> (i32, i32) {
    %c0_i32 = arith.constant 0 : i32
    %c0_i32_0 = arith.constant 0 : i32
    %c0_i32_1 = arith.constant 0 : i32
    return %c0_i32, %c0_i32_0 : i32, i32
  }
  func.func @transform_10(%arg0: i32) -> (i32, i32) {
    %c0_i32 = arith.constant 0 : i32
    %c0_i32_0 = arith.constant 0 : i32
    %c0_i32_1 = arith.constant 0 : i32
    return %c0_i32, %c0_i32_0 : i32, i32
  }
  func.func @transform_11(%arg0: i32) -> (i32, i32) {
    %c0_i32 = arith.constant 0 : i32
    %c0_i32_0 = arith.constant 0 : i32
    return %arg0, %c0_i32 : i32, i32
  }
}

</mosaic_0001>

<llo_original>
// kernel: tpu_custom_call.1
$region0: #{tpu_custom_call.1}
  #allocation0 [shape = 'u32[]', space=smem, size = 0x4, offset = 0x4, fixed_abs, tag = 'smem constant byte address 0x4 - core index']
  #allocation1 [shape = 'u32[72,128]{1,0:T(1,128)}', space=vmem, size = 0x9000, scoped, tag = 'internal scratch']
  %s0 = inlined_call_operand.vmem [shape: f32[200,4], index: 0, kind: input, shape index: {}]
  %s1 = inlined_call_operand.vmem [shape: f32[4,128], index: 1, kind: input, shape index: {}]
  %s2 = inlined_call_operand.vmem [shape: f32[1,128], index: 2, kind: input, shape index: {}]
  %s3 = inlined_call_operand.vmem [shape: f32[1,128], index: 3, kind: input, shape index: {}]
  %s4 = inlined_call_operand.vmem [shape: f32[1,128], index: 4, kind: input, shape index: {}]
  %s5 = inlined_call_operand.vmem [shape: f32[1,128,128], index: 5, kind: input, shape index: {}]
  %s6 = inlined_call_operand.vmem [shape: f32[1,1,128], index: 6, kind: input, shape index: {}]
  %s7 = inlined_call_operand.vmem [shape: f32[1,1,128], index: 7, kind: input, shape index: {}]
  %s8 = inlined_call_operand.vmem [shape: f32[1,1,128], index: 8, kind: input, shape index: {}]
  %s9 = inlined_call_operand.hbm [shape: f32[128,128], index: 9, kind: input, shape index: {}]
  %s10 = inlined_call_operand.vmem [shape: f32[1,128], index: 10, kind: input, shape index: {}]
  %s11 = inlined_call_operand.hbm [shape: f32[200,128], index: 11, kind: output, shape index: {}]
  %s12 = sld [smem:[#allocation0]]
  $region81: #{tpu_custom_call.1} parent=0
    _
  %s14 = ssub.s32 1, %s12
  %s15 = scalar_select 0, %s14, %s12
  $region1: #{tpu_custom_call.1} parent=0
    #allocation2 [shape = 'u8[65536]{0}', space=vmem, size = 0x10000, scoped, tag = 'input window, operand 9, single buffered']
    #allocation3 [shape = 's32[2]{0}', space=sflag, size = 0x8, scoped, tag = 'scoped memory for tpu_custom_call.1']
    #allocation4 [shape = 's32[2]{0}', space=sflag, size = 0x8, scoped, tag = 'scoped memory for tpu_custom_call.1']
    #allocation5 [shape = 'u8[65536]{0}', space=vmem, size = 0x10000, scoped, tag = 'output window, operand 0']
    %16 = vsyncpa [#allocation3], 0
    %17 = vsyncpa [#allocation4], 0
    %s18 = scalar_lea.sflag [#allocation4], 1
    %19 = vsyncpa %s18, 0
    loop: start=0, step=1, limit=6
    $region2: #{tpu_custom_call.1} parent=1 // loop_pre_header
      _
    $region3: #{tpu_custom_call.1} parent=1 // loop_header
      %s21 = sphi 0, %s25
      %p22 = scmp.ge.s32.totalorder %s21, 6
      %s31 = sphi 0, %s33
      %s34 = sphi 0, %s31
      %s35 = sphi 0, %s34
      %s51 = sphi 0, %s35
      %s55 = sphi 0, %s55
      %s57 = sphi 0, %s55
      %s58 = sphi 0, %s57
      %s72 = sphi 0, %s58
      %s76 = sphi 0, %s76
      %s78 = sphi 0, %s76
      %s79 = sphi 0, %s78
      %s93 = sphi 0, %s79
      %s97 = sphi 0, %s97
      %s99 = sphi 0, %s97
      %s100 = sphi 0, %s99
      %s114 = sphi 0, %s100
      %s118 = sphi 0, %s118
      %s120 = sphi 0, %s118
      %s121 = sphi 0, %s120
      %s135 = sphi 0, %s121
      %s139 = sphi 0, %s139
      %s141 = sphi 0, %s139
      %s142 = sphi 0, %s141
      %s156 = sphi 0, %s142
      %s160 = sphi 0, %s160
      %s162 = sphi 0, %s160
      %s163 = sphi 0, %s162
      %s177 = sphi 0, %s163
      %s181 = sphi 0, %s181
      %s183 = sphi 0, %s181
      %s184 = sphi 0, %s183
      %s198 = sphi 0, %s184
      %s202 = sphi 0, %s202
      %s204 = sphi 0, %s202
      %s205 = sphi 0, %s204
      %s219 = sphi 0, %s205
      %s223 = sphi 0, %s223
      %s225 = sphi 0, %s223
      %s226 = sphi 0, %s225
      %s240 = sphi 0, %s226
      %s244 = sphi 0, %s244
      %s246 = sphi 0, %s244
      %s247 = sphi 0, %s246
      %s261 = sphi 0, %s247
      %s267 = sphi 0, %s269
      %s270 = sphi 0, %s267
      %s271 = sphi 0, %s270
      %s287 = sphi 0, %s271
    $region4: #{tpu_custom_call.1} parent=1 // loop_header_branch
      %24 = sbr.rel (%p22) target = $region8
    $region5: #{tpu_custom_call.1} parent=1 // loop_body
      %s26 = ssub.s32 %s21, 1
      %s27 = ssub.s32 %s21, 2
      %s28 = sadd.s32 %s21, 1
      %s29 = ssub.s32 %s21, %s28
      %p30 = scmp.eq.s32.totalorder %s29, 0
      %s32 = sadd.s32 %s31, 1
      %s33 = scalar_select %p30, %s31, %s32
      %p36 = pneg %p30
      %p37 = scmp.eq.s32.totalorder %s21, 3
      %p38 = por %p36, %p37
      %p39 = scmp.ne.s32.totalorder %s31, %s34
      %p40 = scmp.eq.s32.totalorder %s21, 0
      %p41 = por %p39, %p40
      %p42 = scmp.ne.s32.totalorder %s31, %s34
      %p43 = scmp.eq.s32.totalorder %s26, 3
      %p44 = por %p42, %p43
      %p45 = scmp.ne.s32.totalorder %s34, %s35
      %p46 = scmp.eq.s32.totalorder %s26, 0
      %p47 = por %p45, %p46
      %p48 = scmp.ne.s32.totalorder %s34, %s35
      %p49 = scmp.eq.s32.totalorder %s27, 3
      %p50 = por %p48, %p49
      %p52 = scmp.ne.s32.totalorder %s35, %s51
      %p53 = scmp.eq.s32.totalorder %s27, 0
      %p54 = por %p52, %p53
      %s56 = sadd.s32 %s55, 1
      %p59 = scmp.eq.s32.totalorder %s21, 3
      %p60 = scmp.ne.s32.totalorder %s55, %s57
      %p61 = scmp.eq.s32.totalorder %s21, 0
      %p62 = por %p60, %p61
      %p63 = scmp.ne.s32.totalorder %s55, %s57
      %p64 = scmp.eq.s32.totalorder %s26, 3
      %p65 = por %p63, %p64
      %p66 = scmp.ne.s32.totalorder %s57, %s58
      %p67 = scmp.eq.s32.totalorder %s26, 0
      %p68 = por %p66, %p67
      %p69 = scmp.ne.s32.totalorder %s57, %s58
      %p70 = scmp.eq.s32.totalorder %s27, 3
      %p71 = por %p69, %p70
      %p73 = scmp.ne.s32.totalorder %s58, %s72
      %p74 = scmp.eq.s32.totalorder %s27, 0
      %p75 = por %p73, %p74
      %s77 = sadd.s32 %s76, 1
      %p80 = scmp.eq.s32.totalorder %s21, 3
      %p81 = scmp.ne.s32.totalorder %s76, %s78
      %p82 = scmp.eq.s32.totalorder %s21, 0
      %p83 = por %p81, %p82
      %p84 = scmp.ne.s32.totalorder %s76, %s78
      %p85 = scmp.eq.s32.totalorder %s26, 3
      %p86 = por %p84, %p85
      %p87 = scmp.ne.s32.totalorder %s78, %s79
      %p88 = scmp.eq.s32.totalorder %s26, 0
      %p89 = por %p87, %p88
      %p90 = scmp.ne.s32.totalorder %s78, %s79
      %p91 = scmp.eq.s32.totalorder %s27, 3
      %p92 = por %p90, %p91
      %p94 = scmp.ne.s32.totalorder %s79, %s93
      %p95 = scmp.eq.s32.totalorder %s27, 0
      %p96 = por %p94, %p95
      %s98 = sadd.s32 %s97, 1
      %p101 = scmp.eq.s32.totalorder %s21, 3
      %p102 = scmp.ne.s32.totalorder %s97, %s99
      %p103 = scmp.eq.s32.totalorder %s21, 0
      %p104 = por %p102, %p103
      %p105 = scmp.ne.s32.totalorder %s97, %s99
      %p106 = scmp.eq.s32.totalorder %s26, 3
      %p107 = por %p105, %p106
      %p108 = scmp.ne.s32.totalorder %s99, %s100
      %p109 = scmp.eq.s32.totalorder %s26, 0
      %p110 = por %p108, %p109
      %p111 = scmp.ne.s32.totalorder %s99, %s100
      %p112 = scmp.eq.s32.totalorder %s27, 3
      %p113 = por %p111, %p112
      %p115 = scmp.ne.s32.totalorder %s100, %s114
      %p116 = scmp.eq.s32.totalorder %s27, 0
      %p117 = por %p115, %p116
      %s119 = sadd.s32 %s118, 1
      %p122 = scmp.eq.s32.totalorder %s21, 3
      %p123 = scmp.ne.s32.totalorder %s118, %s120
      %p124 = scmp.eq.s32.totalorder %s21, 0
      %p125 = por %p123, %p124
      %p126 = scmp.ne.s32.totalorder %s118, %s120
      %p127 = scmp.eq.s32.totalorder %s26, 3
      %p128 = por %p126, %p127
      %p129 = scmp.ne.s32.totalorder %s120, %s121
      %p130 = scmp.eq.s32.totalorder %s26, 0
      %p131 = por %p129, %p130
      %p132 = scmp.ne.s32.totalorder %s120, %s121
      %p133 = scmp.eq.s32.totalorder %s27, 3
      %p134 = por %p132, %p133
      %p136 = scmp.ne.s32.totalorder %s121, %s135
      %p137 = scmp.eq.s32.totalorder %s27, 0
      %p138 = por %p136, %p137
      %s140 = sadd.s32 %s139, 1
      %p143 = scmp.eq.s32.totalorder %s21, 3
      %p144 = scmp.ne.s32.totalorder %s139, %s141
      %p145 = scmp.eq.s32.totalorder %s21, 0
      %p146 = por %p144, %p145
      %p147 = scmp.ne.s32.totalorder %s139, %s141
      %p148 = scmp.eq.s32.totalorder %s26, 3
      %p149 = por %p147, %p148
      %p150 = scmp.ne.s32.totalorder %s141, %s142
      %p151 = scmp.eq.s32.totalorder %s26, 0
      %p152 = por %p150, %p151
      %p153 = scmp.ne.s32.totalorder %s141, %s142
      %p154 = scmp.eq.s32.totalorder %s27, 3
      %p155 = por %p153, %p154
      %p157 = scmp.ne.s32.totalorder %s142, %s156
      %p158 = scmp.eq.s32.totalorder %s27, 0
      %p159 = por %p157, %p158
      %s161 = sadd.s32 %s160, 1
      %p164 = scmp.eq.s32.totalorder %s21, 3
      %p165 = scmp.ne.s32.totalorder %s160, %s162
      %p166 = scmp.eq.s32.totalorder %s21, 0
      %p167 = por %p165, %p166
      %p168 = scmp.ne.s32.totalorder %s160, %s162
      %p169 = scmp.eq.s32.totalorder %s26, 3
      %p170 = por %p168, %p169
      %p171 = scmp.ne.s32.totalorder %s162, %s163
      %p172 = scmp.eq.s32.totalorder %s26, 0
      %p173 = por %p171, %p172
      %p174 = scmp.ne.s32.totalorder %s162, %s163
      %p175 = scmp.eq.s32.totalorder %s27, 3
      %p176 = por %p174, %p175
      %p178 = scmp.ne.s32.totalorder %s163, %s177
      %p179 = scmp.eq.s32.totalorder %s27, 0
      %p180 = por %p178, %p179
      %s182 = sadd.s32 %s181, 1
      %p185 = scmp.eq.s32.totalorder %s21, 3
      %p186 = scmp.ne.s32.totalorder %s181, %s183
      %p187 = scmp.eq.s32.totalorder %s21, 0
      %p188 = por %p186, %p187
      %p189 = scmp.ne.s32.totalorder %s181, %s183
      %p190 = scmp.eq.s32.totalorder %s26, 3
      %p191 = por %p189, %p190
      %p192 = scmp.ne.s32.totalorder %s183, %s184
      %p193 = scmp.eq.s32.totalorder %s26, 0
      %p194 = por %p192, %p193
      %p195 = scmp.ne.s32.totalorder %s183, %s184
      %p196 = scmp.eq.s32.totalorder %s27, 3
      %p197 = por %p195, %p196
      %p199 = scmp.ne.s32.totalorder %s184, %s198
      %p200 = scmp.eq.s32.totalorder %s27, 0
      %p201 = por %p199, %p200
      %s203 = sadd.s32 %s202, 1
      %p206 = scmp.eq.s32.totalorder %s21, 3
      %p207 = scmp.ne.s32.totalorder %s202, %s204
      %p208 = scmp.eq.s32.totalorder %s21, 0
      %p209 = por %p207, %p208
      %p210 = scmp.ne.s32.totalorder %s202, %s204
      %p211 = scmp.eq.s32.totalorder %s26, 3
      %p212 = por %p210, %p211
      %p213 = scmp.ne.s32.totalorder %s204, %s205
      %p214 = scmp.eq.s32.totalorder %s26, 0
      %p215 = por %p213, %p214
      %p216 = scmp.ne.s32.totalorder %s204, %s205
      %p217 = scmp.eq.s32.totalorder %s27, 3
      %p218 = por %p216, %p217
      %p220 = scmp.ne.s32.totalorder %s205, %s219
      %p221 = scmp.eq.s32.totalorder %s27, 0
      %p222 = por %p220, %p221
      %s224 = sadd.s32 %s223, 1
      %p227 = scmp.eq.s32.totalorder %s21, 3
      %p228 = scmp.ne.s32.totalorder %s223, %s225
      %p229 = scmp.eq.s32.totalorder %s21, 0
      %p230 = por %p228, %p229
      %p231 = scmp.ne.s32.totalorder %s223, %s225
      %p232 = scmp.eq.s32.totalorder %s26, 3
      %p233 = por %p231, %p232
      %p234 = scmp.ne.s32.totalorder %s225, %s226
      %p235 = scmp.eq.s32.totalorder %s26, 0
      %p236 = por %p234, %p235
      %p237 = scmp.ne.s32.totalorder %s225, %s226
      %p238 = scmp.eq.s32.totalorder %s27, 3
      %p239 = por %p237, %p238
      %p241 = scmp.ne.s32.totalorder %s226, %s240
      %p242 = scmp.eq.s32.totalorder %s27, 0
      %p243 = por %p241, %p242
      %s245 = sadd.s32 %s244, 1
      %p248 = scmp.eq.s32.totalorder %s21, 3
      %p249 = scmp.ne.s32.totalorder %s244, %s246
      %p250 = scmp.eq.s32.totalorder %s21, 0
      %p251 = por %p249, %p250
      %p252 = scmp.ne.s32.totalorder %s244, %s246
      %p253 = scmp.eq.s32.totalorder %s26, 3
      %p254 = por %p252, %p253
      %p255 = scmp.ne.s32.totalorder %s246, %s247
      %p256 = scmp.eq.s32.totalorder %s26, 0
      %p257 = por %p255, %p256
      %p258 = scmp.ne.s32.totalorder %s246, %s247
      %p259 = scmp.eq.s32.totalorder %s27, 3
      %p260 = por %p258, %p259
      %p262 = scmp.ne.s32.totalorder %s247, %s261
      %p263 = scmp.eq.s32.totalorder %s27, 0
      %p264 = por %p262, %p263
      %s265 = ssub.s32 %s21, %s28
      %p266 = scmp.eq.s32.totalorder %s265, 0
      %s268 = sadd.s32 %s267, 1
      %s269 = scalar_select %p266, %s267, %s268
      %p272 = pneg %p266
      %p273 = scmp.eq.s32.totalorder %s21, 3
      %p274 = por %p272, %p273
      %p275 = scmp.ne.s32.totalorder %s267, %s270
      %p276 = scmp.eq.s32.totalorder %s21, 0
      %p277 = por %p275, %p276
      %p278 = scmp.ne.s32.totalorder %s267, %s270
      %p279 = scmp.eq.s32.totalorder %s26, 3
      %p280 = por %p278, %p279
      %p281 = scmp.ne.s32.totalorder %s270, %s271
      %p282 = scmp.eq.s32.totalorder %s26, 0
      %p283 = por %p281, %p282
      %p284 = scmp.ne.s32.totalorder %s270, %s271
      %p285 = scmp.eq.s32.totalorder %s27, 3
      %p286 = por %p284, %p285
      %p288 = scmp.ne.s32.totalorder %s271, %s287
      %p289 = scmp.eq.s32.totalorder %s27, 0
      %p290 = por %p288, %p289
      %p291 = scmp.le.s32.totalorder 1, %s21
      %p292 = scmp.lt.s32.totalorder %s21, 5
      %p293 = pnand %p291, %p292
      %p294 = pneg %p293
      // Predicated region
      $region9: #{tpu_custom_call.1} parent=5 // pred_check
        _
      $region10: #{tpu_custom_call.1} parent=5 // pred_check_branch
        %296 = sbr.rel (%p293) target = $region12
      $region11: #{tpu_custom_call.1} parent=5 // pred_region
        %s297 = ssub.s32 %s21, 1
        // Predicated region
        $region13: #{tpu_custom_call.1} parent=11 // pred_check
          %p298 = pneg %p68
        $region14: #{tpu_custom_call.1} parent=11 // pred_check_branch
          %300 = sbr.rel (%p298) target = $region16
        $region15: #{tpu_custom_call.1} parent=11 // pred_region
          _
        $region16: #{tpu_custom_call.1} parent=11 // pred_fallthru
          _
        // Predicated region
        $region17: #{tpu_custom_call.1} parent=11 // pred_check
          %p301 = pneg %p89
        $region18: #{tpu_custom_call.1} parent=11 // pred_check_branch
          %303 = sbr.rel (%p301) target = $region20
        $region19: #{tpu_custom_call.1} parent=11 // pred_region
          _
        $region20: #{tpu_custom_call.1} parent=11 // pred_fallthru
          _
        // Predicated region
        $region21: #{tpu_custom_call.1} parent=11 // pred_check
          %p304 = pneg %p110
        $region22: #{tpu_custom_call.1} parent=11 // pred_check_branch
          %306 = sbr.rel (%p304) target = $region24
        $region23: #{tpu_custom_call.1} parent=11 // pred_region
          _
        $region24: #{tpu_custom_call.1} parent=11 // pred_fallthru
          _
        // Predicated region
        $region25: #{tpu_custom_call.1} parent=11 // pred_check
          %p307 = pneg %p131
        $region26: #{tpu_custom_call.1} parent=11 // pred_check_branch
          %309 = sbr.rel (%p307) target = $region28
        $region27: #{tpu_custom_call.1} parent=11 // pred_region
          _
        $region28: #{tpu_custom_call.1} parent=11 // pred_fallthru
          _
        // Predicated region
        $region29: #{tpu_custom_call.1} parent=11 // pred_check
          %p310 = pneg %p152
        $region30: #{tpu_custom_call.1} parent=11 // pred_check_branch
          %312 = sbr.rel (%p310) target = $region32
        $region31: #{tpu_custom_call.1} parent=11 // pred_region
          _
        $region32: #{tpu_custom_call.1} parent=11 // pred_fallthru
          _
        // Predicated region
        $region33: #{tpu_custom_call.1} parent=11 // pred_check
          %p313 = pneg %p173
        $region34: #{tpu_custom_call.1} parent=11 // pred_check_branch
          %315 = sbr.rel (%p313) target = $region36
        $region35: #{tpu_custom_call.1} parent=11 // pred_region
          _
        $region36: #{tpu_custom_call.1} parent=11 // pred_fallthru
          _
        // Predicated region
        $region37: #{tpu_custom_call.1} parent=11 // pred_check
          %p316 = pneg %p194
        $region38: #{tpu_custom_call.1} parent=11 // pred_check_branch
          %318 = sbr.rel (%p316) target = $region40
        $region39: #{tpu_custom_call.1} parent=11 // pred_region
          _
        $region40: #{tpu_custom_call.1} parent=11 // pred_fallthru
          _
        // Predicated region
        $region41: #{tpu_custom_call.1} parent=11 // pred_check
          %p319 = pneg %p215
        $region42: #{tpu_custom_call.1} parent=11 // pred_check_branch
          %321 = sbr.rel (%p319) target = $region44
        $region43: #{tpu_custom_call.1} parent=11 // pred_region
          _
        $region44: #{tpu_custom_call.1} parent=11 // pred_fallthru
          _
        // Predicated region
        $region45: #{tpu_custom_call.1} parent=11 // pred_check
          %p322 = pneg %p236
        $region46: #{tpu_custom_call.1} parent=11 // pred_check_branch
          %324 = sbr.rel (%p322) target = $region48
        $region47: #{tpu_custom_call.1} parent=11 // pred_region
          %326 = vsyncadd [#allocation3], 0
          %s327 = sshll.u32 %s9, 4
          %s328 = int_to_ptr.hbm [resolvable:$true] %s327
          %s329 = sshll.u32 [#allocation2], 4
          %s330 = int_to_ptr.vmem [resolvable:$true] %s329
          %335 = dma.hbm_to_vmem [thread:$0]  %s328, 2048, %s330, [#allocation3], 128, 128, 8
        $region48: #{tpu_custom_call.1} parent=11 // pred_fallthru
          _
        // Predicated region
        $region49: #{tpu_custom_call.1} parent=11 // pred_check
          %p336 = pneg %p257
        $region50: #{tpu_custom_call.1} parent=11 // pred_check_branch
          %338 = sbr.rel (%p336) target = $region52
        $region51: #{tpu_custom_call.1} parent=11 // pred_region
          _
        $region52: #{tpu_custom_call.1} parent=11 // pred_fallthru
          _
      $region12: #{tpu_custom_call.1} parent=5 // pred_fallthru
        _
      %p339 = scmp.lt.s32.totalorder %s21, 4
      // Predicated region
      $region53: #{tpu_custom_call.1} parent=5 // pred_check
        %p340 = pneg %p339
      $region54: #{tpu_custom_call.1} parent=5 // pred_check_branch
        %342 = sbr.rel (%p340) target = $region56
      $region55: #{tpu_custom_call.1} parent=5 // pred_region
        // Predicated region
        $region57: #{tpu_custom_call.1} parent=55 // pred_check
          %p343 = pneg %p41
        $region58: #{tpu_custom_call.1} parent=55 // pred_check_branch
          %345 = sbr.rel (%p343) target = $region60
        $region59: #{tpu_custom_call.1} parent=55 // pred_region
          %s346 = smul.u32 8, %s21
          %s347 = ssub.s32 25, %s346
          %p348 = scmp.lt.s32.totalorder %s347, 8
          %s349 = scalar_select %p348, %s347, 8
          %s350 = smul.u32 8, %s349
          %p351 = scmp.lt.s32.totalorder %s346, 24
          %s352 = scalar_select %p351, %s346, 24
          %s353 = smul.addr %s352, 8
          %s354 = scalar_lea.vmem %s0, %s353
          %s355 = smul.u32 8, %s21
          %s356 = ssub.s32 25, %s355
          %p357 = scmp.lt.s32.totalorder %s356, 8
          %s358 = scalar_select %p357, %s356, 8
          %s359 = smul.u32 8, %s358
        $region60: #{tpu_custom_call.1} parent=55 // pred_fallthru
          _
      $region56: #{tpu_custom_call.1} parent=5 // pred_fallthru
        _
      %p360 = scmp.le.s32.totalorder 1, %s21
      %p361 = scmp.lt.s32.totalorder %s21, 5
      %p362 = pnand %p360, %p361
      %p363 = pneg %p362
      // Predicated region
      $region61: #{tpu_custom_call.1} parent=5 // pred_check
        _
      $region62: #{tpu_custom_call.1} parent=5 // pred_check_branch
        %365 = sbr.rel (%p362) target = $region64
      $region63: #{tpu_custom_call.1} parent=5 // pred_region
        %s366 = ssub.s32 %s21, 1
        // Predicated region
        $region65: #{tpu_custom_call.1} parent=63 // pred_check
          %p367 = pneg %p236
        $region66: #{tpu_custom_call.1} parent=63 // pred_check_branch
          %369 = sbr.rel (%p367) target = $region68
        $region67: #{tpu_custom_call.1} parent=63 // pred_region
          %371 = dma.done [#allocation3], 2048
        $region68: #{tpu_custom_call.1} parent=63 // pred_fallthru
          _
        %s372 = smul.u32 8, %s26
        %s373 = ssub.s32 25, %s372
        %p374 = scmp.lt.s32.totalorder %s373, 8
        %s375 = scalar_select %p374, %s373, 8
        %s376 = smul.u32 8, %s375
        %p377 = scmp.lt.s32.totalorder %s372, 24
        %s378 = scalar_select %p377, %s372, 24
        %s379 = smul.addr %s378, 8
        %s380 = scalar_lea.vmem %s0, %s379
        %p381 = pneg %p47
        %p382 = pneg %p44
        %p383 = pneg %p68
        %p384 = pneg %p65
        %p385 = pneg %p89
        %p386 = pneg %p86
        %p387 = pneg %p110
        %p388 = pneg %p107
        %p389 = pneg %p131
        %p390 = pneg %p128
        %p391 = pneg %p152
        %p392 = pneg %p149
        %p393 = pneg %p173
        %p394 = pneg %p170
        %p395 = pneg %p194
        %p396 = pneg %p191
        %p397 = pneg %p215
        %p398 = pneg %p212
        %p399 = pneg %p236
        %p400 = pneg %p233
        %p401 = pneg %p257
        %p402 = pneg %p254
        %p403 = pneg %p283
        %p404 = pneg %p280
        %s405 = sand.u32 %s270, 1
        %s406 = scalar_lea.sflag [#allocation4], %s405
        %s407 = sand.u32 %s270, 1
        %s408 = smul.addr %s407, 64
        %s409 = scalar_lea.vmem [#allocation5], %s408
        %s410 = smul.u32 8, %s26
        %s411 = ssub.s32 25, %s410
        %p412 = scmp.lt.s32.totalorder %s411, 8
        %s413 = scalar_select %p412, %s411, 8
        %s414 = smul.u32 8, %s413
        %p415 = scmp.lt.s32.totalorder %s410, 24
        %s416 = scalar_select %p415, %s410, 24
        %s417 = smul.addr %s416, 8
        %s418 = scalar_lea.vmem %s0, %s417
        %s419 = smul.u32 8, %s26
        %s420 = ssub.s32 25, %s419
        %p421 = scmp.lt.s32.totalorder %s420, 8
        %s422 = scalar_select %p421, %s420, 8
        %s423 = smul.u32 8, %s422
        %s424 = smul.u32 8, %s26
        %s425 = ssub.s32 25, %s424
        %p426 = scmp.lt.s32.totalorder %s425, 8
        %s427 = scalar_select %p426, %s425, 8
        %s428 = smul.u32 8, %s427
        %v429 = vld [vmem:[%s418] sm:$0xff]
        %v430 = vld [vmem:[%s418 + $0x8] sm:$0xff]
        %v431 = vld [vmem:[%s418 + $0x10] sm:$0xff]
        %v432 = vld [vmem:[%s418 + $0x18] sm:$0xff]
        %v433 = vld [vmem:[%s418 + $0x20] sm:$0xff]
        %v434 = vld [vmem:[%s418 + $0x28] sm:$0xff]
        %v435 = vld [vmem:[%s418 + $0x30] sm:$0xff]
        %v436 = vld [vmem:[%s418 + $0x38] sm:$0xff]
        %v437 = vld [vmem:[%s1] sm:$0xf]
        %v438 = vld [vmem:[%s2] sm:$0x1]
        %v440 = vperm.slane %v438, 0
        %vm442 = vcmask 31744
        %v444 = vsel %vm442, %v429, 0
        %v447 = vsel %vm442, %v430, 0
        %v450 = vsel %vm442, %v431, 0
        %v453 = vsel %vm442, %v432, 0
        %v456 = vsel %vm442, %v433, 0
        %v459 = vsel %vm442, %v434, 0
        %v462 = vsel %vm442, %v435, 0
        %v465 = vsel %vm442, %v436, 0
        %vm467 = vcmask 1043456
        %v469 = vsel %vm467, %v437, 0
        %471 = vmatpush.msra.mxu0 0.0
        %472 = vmatpush.msra.mxu0 0.0
        %473 = vmatpush.msra.mxu0 0.0
        %474 = vmatpush.msra.mxu0 0.0
        %475 = vmatpush.msra.mxu0 0.0
        %476 = vmatpush.msra.mxu0 0.0
        %477 = vmatpush.msra.mxu0 0.0
        %478 = vmatpush.msra.mxu0 0.0
        %479 = vmatpush.msra.mxu0 0.0
        %480 = vmatpush.msra.mxu0 0.0
        %481 = vmatpush.msra.mxu0 0.0
        %482 = vmatpush.msra.mxu0 0.0
        %483 = vmatpush.msra.mxu0 0.0
        %484 = vmatpush.msra.mxu0 0.0
        %485 = vmatpush.msra.mxu0 0.0
        %486 = vmatpush.msra.mxu0 %v469
        %487 = vmatmul.f32.gmra.mxu0 %v444
        %v488 = vpop.f32.mrf.mxu0
        %v489 = vadd.f32 %v440, %v488
        %490 = vmatmul.f32.gmra.mxu0 %v447
        %v491 = vpop.f32.mrf.mxu0
        %v492 = vadd.f32 %v440, %v491
        %493 = vmatmul.f32.gmra.mxu0 %v450
        %v494 = vpop.f32.mrf.mxu0
        %v495 = vadd.f32 %v440, %v494
        %496 = vmatmul.f32.gmra.mxu0 %v453
        %v497 = vpop.f32.mrf.mxu0
        %v498 = vadd.f32 %v440, %v497
        %499 = vmatmul.f32.gmra.mxu0 %v456
        %v500 = vpop.f32.mrf.mxu0
        %v501 = vadd.f32 %v440, %v500
        %502 = vmatmul.f32.gmra.mxu0 %v459
        %v503 = vpop.f32.mrf.mxu0
        %v504 = vadd.f32 %v440, %v503
        %505 = vmatmul.f32.gmra.mxu0 %v462
        %v506 = vpop.f32.mrf.mxu0
        %v507 = vadd.f32 %v440, %v506
        %508 = vmatmul.f32.gmra.mxu0 %v465
        %v509 = vpop.f32.mrf.mxu0
        %v510 = vadd.f32 %v440, %v509
        %511 = vdwg.mxu0
        %v512 = vld [vmem:[%s3] sm:$0x1]
        %v513 = vld [vmem:[%s4] sm:$0x1]
        %514 = vadd.xlane.f32.xlu0 %v489
        %v515 = vpop.xlane.xlu0 %514
        %516 = vadd.xlane.f32.xlu0 %v492
        %v517 = vpop.xlane.xlu0 %516
        %518 = vadd.xlane.f32.xlu0 %v495
        %v519 = vpop.xlane.xlu0 %518
        %520 = vadd.xlane.f32.xlu0 %v498
        %v521 = vpop.xlane.xlu0 %520
        %522 = vadd.xlane.f32.xlu0 %v501
        %v523 = vpop.xlane.xlu0 %522
        %524 = vadd.xlane.f32.xlu0 %v504
        %v525 = vpop.xlane.xlu0 %524
        %526 = vadd.xlane.f32.xlu0 %v507
        %v527 = vpop.xlane.xlu0 %526
        %528 = vadd.xlane.f32.xlu0 %v510
        %v529 = vpop.xlane.xlu0 %528
        %v530 = vmul.f32 %v489, %v489
        %v531 = vmul.f32 %v492, %v492
        %v532 = vmul.f32 %v495, %v495
        %v533 = vmul.f32 %v498, %v498
        %v534 = vmul.f32 %v501, %v501
        %v535 = vmul.f32 %v504, %v504
        %v536 = vmul.f32 %v507, %v507
        %v537 = vmul.f32 %v510, %v510
        %538 = vadd.xlane.f32.xlu0 %v530
        %v539 = vpop.xlane.xlu0 %538
        %540 = vadd.xlane.f32.xlu0 %v531
        %v541 = vpop.xlane.xlu0 %540
        %542 = vadd.xlane.f32.xlu0 %v532
        %v543 = vpop.xlane.xlu0 %542
        %544 = vadd.xlane.f32.xlu0 %v533
        %v545 = vpop.xlane.xlu0 %544
        %546 = vadd.xlane.f32.xlu0 %v534
        %v547 = vpop.xlane.xlu0 %546
        %548 = vadd.xlane.f32.xlu0 %v535
        %v549 = vpop.xlane.xlu0 %548
        %550 = vadd.xlane.f32.xlu0 %v536
        %v551 = vpop.xlane.xlu0 %550
        %552 = vadd.xlane.f32.xlu0 %v537
        %v553 = vpop.xlane.xlu0 %552
        %v554 = vmul.f32 %v515, 0.03125
        %v555 = vmul.f32 %v517, 0.03125
        %v556 = vmul.f32 %v519, 0.03125
        %v557 = vmul.f32 %v521, 0.03125
        %v558 = vmul.f32 %v523, 0.03125
        %v559 = vmul.f32 %v525, 0.03125
        %v560 = vmul.f32 %v527, 0.03125
        %v561 = vmul.f32 %v529, 0.03125
        %v562 = vmul.f32 %v539, 0.03125
        %v563 = vmul.f32 %v541, 0.03125
        %v564 = vmul.f32 %v543, 0.03125
        %v565 = vmul.f32 %v545, 0.03125
        %v566 = vmul.f32 %v547, 0.03125
        %v567 = vmul.f32 %v549, 0.03125
        %v568 = vmul.f32 %v551, 0.03125
        %v569 = vmul.f32 %v553, 0.03125
        %v570 = vmul.f32 %v554, %v554
        %v571 = vmul.f32 %v555, %v555
        %v572 = vmul.f32 %v556, %v556
        %v573 = vmul.f32 %v557, %v557
        %v574 = vmul.f32 %v558, %v558
        %v575 = vmul.f32 %v559, %v559
        %v576 = vmul.f32 %v560, %v560
        %v577 = vmul.f32 %v561, %v561
        %v578 = vsub.f32 %v562, %v570
        %v579 = vsub.f32 %v563, %v571
        %v580 = vsub.f32 %v564, %v572
        %v581 = vsub.f32 %v565, %v573
        %v582 = vsub.f32 %v566, %v574
        %v583 = vsub.f32 %v567, %v575
        %v584 = vsub.f32 %v568, %v576
        %v585 = vsub.f32 %v569, %v577
        %v586 = vmax.f32 %v578, 0.0
        %v587 = vmax.f32 %v579, 0.0
        %v588 = vmax.f32 %v580, 0.0
        %v589 = vmax.f32 %v581, 0.0
        %v590 = vmax.f32 %v582, 0.0
        %v591 = vmax.f32 %v583, 0.0
        %v592 = vmax.f32 %v584, 0.0
        %v593 = vmax.f32 %v585, 0.0
        %v594 = vsub.f32 %v489, %v554
        %v595 = vsub.f32 %v492, %v555
        %v596 = vsub.f32 %v495, %v556
        %v597 = vsub.f32 %v498, %v557
        %v598 = vsub.f32 %v501, %v558
        %v599 = vsub.f32 %v504, %v559
        %v600 = vsub.f32 %v507, %v560
        %v601 = vsub.f32 %v510, %v561
        %v602 = vadd.f32 %v586, 1e-05
        %v603 = vadd.f32 %v587, 1e-05
        %v604 = vadd.f32 %v588, 1e-05
        %v605 = vadd.f32 %v589, 1e-05
        %v606 = vadd.f32 %v590, 1e-05
        %v607 = vadd.f32 %v591, 1e-05
        %v608 = vadd.f32 %v592, 1e-05
        %v609 = vadd.f32 %v593, 1e-05
        %v610 = vrsqrt.pop %v602
        %v611 = vmul.f32 %v610, %v602
        %v612 = vmul.f32 %v611, %v610
        %v613 = vmul.f32 0.5, %v612
        %v614 = vsub.f32 1.5, %v613
        %v615 = vmul.f32 %v610, %v614
        %vm616 = vweird.f32 %v602
        %vm617 = vweird.f32 %v610
        %vm618 = vmor %vm616, %vm617
        %v619 = vsel %vm618, %v610, %v615
        %v620 = vrsqrt.pop %v603
        %v621 = vmul.f32 %v620, %v603
        %v622 = vmul.f32 %v621, %v620
        %v623 = vmul.f32 0.5, %v622
        %v624 = vsub.f32 1.5, %v623
        %v625 = vmul.f32 %v620, %v624
        %vm626 = vweird.f32 %v603
        %vm627 = vweird.f32 %v620
        %vm628 = vmor %vm626, %vm627
        %v629 = vsel %vm628, %v620, %v625
        %v630 = vrsqrt.pop %v604
        %v631 = vmul.f32 %v630, %v604
        %v632 = vmul.f32 %v631, %v630
        %v633 = vmul.f32 0.5, %v632
        %v634 = vsub.f32 1.5, %v633
        %v635 = vmul.f32 %v630, %v634
        %vm636 = vweird.f32 %v604
        %vm637 = vweird.f32 %v630
        %vm638 = vmor %vm636, %vm637
        %v639 = vsel %vm638, %v630, %v635
        %v640 = vrsqrt.pop %v605
        %v641 = vmul.f32 %v640, %v605
        %v642 = vmul.f32 %v641, %v640
        %v643 = vmul.f32 0.5, %v642
        %v644 = vsub.f32 1.5, %v643
        %v645 = vmul.f32 %v640, %v644
        %vm646 = vweird.f32 %v605
        %vm647 = vweird.f32 %v640
        %vm648 = vmor %vm646, %vm647
        %v649 = vsel %vm648, %v640, %v645
        %v650 = vrsqrt.pop %v606
        %v651 = vmul.f32 %v650, %v606
        %v652 = vmul.f32 %v651, %v650
        %v653 = vmul.f32 0.5, %v652
        %v654 = vsub.f32 1.5, %v653
        %v655 = vmul.f32 %v650, %v654
        %vm656 = vweird.f32 %v606
        %vm657 = vweird.f32 %v650
        %vm658 = vmor %vm656, %vm657
        %v659 = vsel %vm658, %v650, %v655
        %v660 = vrsqrt.pop %v607
        %v661 = vmul.f32 %v660, %v607
        %v662 = vmul.f32 %v661, %v660
        %v663 = vmul.f32 0.5, %v662
        %v664 = vsub.f32 1.5, %v663
        %v665 = vmul.f32 %v660, %v664
        %vm666 = vweird.f32 %v607
        %vm667 = vweird.f32 %v660
        %vm668 = vmor %vm666, %vm667
        %v669 = vsel %vm668, %v660, %v665
        %v670 = vrsqrt.pop %v608
        %v671 = vmul.f32 %v670, %v608
        %v672 = vmul.f32 %v671, %v670
        %v673 = vmul.f32 0.5, %v672
        %v674 = vsub.f32 1.5, %v673
        %v675 = vmul.f32 %v670, %v674
        %vm676 = vweird.f32 %v608
        %vm677 = vweird.f32 %v670
        %vm678 = vmor %vm676, %vm677
        %v679 = vsel %vm678, %v670, %v675
        %v680 = vrsqrt.pop %v609
        %v681 = vmul.f32 %v680, %v609
        %v682 = vmul.f32 %v681, %v680
        %v683 = vmul.f32 0.5, %v682
        %v684 = vsub.f32 1.5, %v683
        %v685 = vmul.f32 %v680, %v684
        %vm686 = vweird.f32 %v609
        %vm687 = vweird.f32 %v680
        %vm688 = vmor %vm686, %vm687
        %v689 = vsel %vm688, %v680, %v685
        %v690 = vmul.f32 %v594, %v619
        %v691 = vmul.f32 %v595, %v629
        %v692 = vmul.f32 %v596, %v639
        %v693 = vmul.f32 %v597, %v649
        %v694 = vmul.f32 %v598, %v659
        %v695 = vmul.f32 %v599, %v669
        %v696 = vmul.f32 %v600, %v679
        %v697 = vmul.f32 %v601, %v689
        %v699 = vperm.slane %v512, 0
        %v701 = vmul.f32 %v690, %v699
        %v702 = vmul.f32 %v691, %v699
        %v703 = vmul.f32 %v692, %v699
        %v704 = vmul.f32 %v693, %v699
        %v705 = vmul.f32 %v694, %v699
        %v706 = vmul.f32 %v695, %v699
        %v707 = vmul.f32 %v696, %v699
        %v708 = vmul.f32 %v697, %v699
        %v710 = vperm.slane %v513, 0
        %v712 = vadd.f32 %v701, %v710
        %v713 = vadd.f32 %v702, %v710
        %v714 = vadd.f32 %v703, %v710
        %v715 = vadd.f32 %v704, %v710
        %v716 = vadd.f32 %v705, %v710
        %v717 = vadd.f32 %v706, %v710
        %v718 = vadd.f32 %v707, %v710
        %v719 = vadd.f32 %v708, %v710
        %v720 = vmul.f32 %v712, 0.5
        %v721 = vmul.f32 %v713, 0.5
        %v722 = vmul.f32 %v714, 0.5
        %v723 = vmul.f32 %v715, 0.5
        %v724 = vmul.f32 %v716, 0.5
        %v725 = vmul.f32 %v717, 0.5
        %v726 = vmul.f32 %v718, 0.5
        %v727 = vmul.f32 %v719, 0.5
        %v728 = vtanh.pop %v720
        %v729 = vtanh.pop %v721
        %v730 = vtanh.pop %v722
        %v731 = vtanh.pop %v723
        %v732 = vtanh.pop %v724
        %v733 = vtanh.pop %v725
        %v734 = vtanh.pop %v726
        %v735 = vtanh.pop %v727
        %v736 = vadd.f32 %v728, 1.0
        %v737 = vadd.f32 %v729, 1.0
        %v738 = vadd.f32 %v730, 1.0
        %v739 = vadd.f32 %v731, 1.0
        %v740 = vadd.f32 %v732, 1.0
        %v741 = vadd.f32 %v733, 1.0
        %v742 = vadd.f32 %v734, 1.0
        %v743 = vadd.f32 %v735, 1.0
        %v744 = vmul.f32 %v736, 0.5
        %v745 = vmul.f32 %v737, 0.5
        %v746 = vmul.f32 %v738, 0.5
        %v747 = vmul.f32 %v739, 0.5
        %v748 = vmul.f32 %v740, 0.5
        %v749 = vmul.f32 %v741, 0.5
        %v750 = vmul.f32 %v742, 0.5
        %v751 = vmul.f32 %v743, 0.5
        %v752 = vmul.f32 %v712, %v744
        %v753 = vmul.f32 %v713, %v745
        %v754 = vmul.f32 %v714, %v746
        %v755 = vmul.f32 %v715, %v747
        %v756 = vmul.f32 %v716, %v748
        %v757 = vmul.f32 %v717, %v749
        %v758 = vmul.f32 %v718, %v750
        %v759 = vmul.f32 %v719, %v751
        %v760 = vld [vmem:[%s5] sm:$0xff]
        %v761 = vld [vmem:[%s5 + $0x8] sm:$0xff]
        %v762 = vld [vmem:[%s5 + $0x10] sm:$0xff]
        %v763 = vld [vmem:[%s5 + $0x18] sm:$0xff]
        %v764 = vld [vmem:[%s5 + $0x20] sm:$0xff]
        %v765 = vld [vmem:[%s5 + $0x28] sm:$0xff]
        %v766 = vld [vmem:[%s5 + $0x30] sm:$0xff]
        %v767 = vld [vmem:[%s5 + $0x38] sm:$0xff]
        %v768 = vld [vmem:[%s5 + $0x40] sm:$0xff]
        %v769 = vld [vmem:[%s5 + $0x48] sm:$0xff]
        %v770 = vld [vmem:[%s5 + $0x50] sm:$0xff]
        %v771 = vld [vmem:[%s5 + $0x58] sm:$0xff]
        %v772 = vld [vmem:[%s5 + $0x60] sm:$0xff]
        %v773 = vld [vmem:[%s5 + $0x68] sm:$0xff]
        %v774 = vld [vmem:[%s5 + $0x70] sm:$0xff]
        %v775 = vld [vmem:[%s5 + $0x78] sm:$0xff]
        %v776 = vld [vmem:[%s6] sm:$0x1]
        %v778 = vperm.slane %v776, 0
        %780 = vmatpush.msra.mxu0 %v775
        %781 = vmatpush.msra.mxu0 %v774
        %782 = vmatpush.msra.mxu0 %v773
        %783 = vmatpush.msra.mxu0 %v772
        %784 = vmatpush.msra.mxu0 %v771
        %785 = vmatpush.msra.mxu0 %v770
        %786 = vmatpush.msra.mxu0 %v769
        %787 = vmatpush.msra.mxu0 %v768
        %788 = vmatpush.msra.mxu0 %v767
        %789 = vmatpush.msra.mxu0 %v766
        %790 = vmatpush.msra.mxu0 %v765
        %791 = vmatpush.msra.mxu0 %v764
        %792 = vmatpush.msra.mxu0 %v763
        %793 = vmatpush.msra.mxu0 %v762
        %794 = vmatpush.msra.mxu0 %v761
        %795 = vmatpush.msra.mxu0 %v760
        %796 = vmatmul.f32.gmra.mxu0 %v752
        %v797 = vpop.f32.mrf.mxu0
        %v798 = vadd.f32 %v778, %v797
        %799 = vmatmul.f32.gmra.mxu0 %v753
        %v800 = vpop.f32.mrf.mxu0
        %v801 = vadd.f32 %v778, %v800
        %802 = vmatmul.f32.gmra.mxu0 %v754
        %v803 = vpop.f32.mrf.mxu0
        %v804 = vadd.f32 %v778, %v803
        %805 = vmatmul.f32.gmra.mxu0 %v755
        %v806 = vpop.f32.mrf.mxu0
        %v807 = vadd.f32 %v778, %v806
        %808 = vmatmul.f32.gmra.mxu0 %v756
        %v809 = vpop.f32.mrf.mxu0
        %v810 = vadd.f32 %v778, %v809
        %811 = vmatmul.f32.gmra.mxu0 %v757
        %v812 = vpop.f32.mrf.mxu0
        %v813 = vadd.f32 %v778, %v812
        %814 = vmatmul.f32.gmra.mxu0 %v758
        %v815 = vpop.f32.mrf.mxu0
        %v816 = vadd.f32 %v778, %v815
        %817 = vmatmul.f32.gmra.mxu0 %v759
        %v818 = vpop.f32.mrf.mxu0
        %v819 = vadd.f32 %v778, %v818
        %820 = vdwg.mxu0
        %v821 = vld [vmem:[%s7] sm:$0x1]
        %v822 = vld [vmem:[%s8] sm:$0x1]
        %823 = vadd.xlane.f32.xlu0 %v798
        %v824 = vpop.xlane.xlu0 %823
        %825 = vadd.xlane.f32.xlu0 %v801
        %v826 = vpop.xlane.xlu0 %825
        %827 = vadd.xlane.f32.xlu0 %v804
        %v828 = vpop.xlane.xlu0 %827
        %829 = vadd.xlane.f32.xlu0 %v807
        %v830 = vpop.xlane.xlu0 %829
        %831 = vadd.xlane.f32.xlu0 %v810
        %v832 = vpop.xlane.xlu0 %831
        %833 = vadd.xlane.f32.xlu0 %v813
        %v834 = vpop.xlane.xlu0 %833
        %835 = vadd.xlane.f32.xlu0 %v816
        %v836 = vpop.xlane.xlu0 %835
        %837 = vadd.xlane.f32.xlu0 %v819
        %v838 = vpop.xlane.xlu0 %837
        %v839 = vmul.f32 %v798, %v798
        %v840 = vmul.f32 %v801, %v801
        %v841 = vmul.f32 %v804, %v804
        %v842 = vmul.f32 %v807, %v807
        %v843 = vmul.f32 %v810, %v810
        %v844 = vmul.f32 %v813, %v813
        %v845 = vmul.f32 %v816, %v816
        %v846 = vmul.f32 %v819, %v819
        %847 = vadd.xlane.f32.xlu0 %v839
        %v848 = vpop.xlane.xlu0 %847
        %849 = vadd.xlane.f32.xlu0 %v840
        %v850 = vpop.xlane.xlu0 %849
        %851 = vadd.xlane.f32.xlu0 %v841
        %v852 = vpop.xlane.xlu0 %851
        %853 = vadd.xlane.f32.xlu0 %v842
        %v854 = vpop.xlane.xlu0 %853
        %855 = vadd.xlane.f32.xlu0 %v843
        %v856 = vpop.xlane.xlu0 %855
        %857 = vadd.xlane.f32.xlu0 %v844
        %v858 = vpop.xlane.xlu0 %857
        %859 = vadd.xlane.f32.xlu0 %v845
        %v860 = vpop.xlane.xlu0 %859
        %861 = vadd.xlane.f32.xlu0 %v846
        %v862 = vpop.xlane.xlu0 %861
        %v863 = vmul.f32 %v824, 0.03125
        %v864 = vmul.f32 %v826, 0.03125
        %v865 = vmul.f32 %v828, 0.03125
        %v866 = vmul.f32 %v830, 0.03125
        %v867 = vmul.f32 %v832, 0.03125
        %v868 = vmul.f32 %v834, 0.03125
        %v869 = vmul.f32 %v836, 0.03125
        %v870 = vmul.f32 %v838, 0.03125
        %v871 = vmul.f32 %v848, 0.03125
        %v872 = vmul.f32 %v850, 0.03125
        %v873 = vmul.f32 %v852, 0.03125
        %v874 = vmul.f32 %v854, 0.03125
        %v875 = vmul.f32 %v856, 0.03125
        %v876 = vmul.f32 %v858, 0.03125
        %v877 = vmul.f32 %v860, 0.03125
        %v878 = vmul.f32 %v862, 0.03125
        %v879 = vmul.f32 %v863, %v863
        %v880 = vmul.f32 %v864, %v864
        %v881 = vmul.f32 %v865, %v865
        %v882 = vmul.f32 %v866, %v866
        %v883 = vmul.f32 %v867, %v867
        %v884 = vmul.f32 %v868, %v868
        %v885 = vmul.f32 %v869, %v869
        %v886 = vmul.f32 %v870, %v870
        %v887 = vsub.f32 %v871, %v879
        %v888 = vsub.f32 %v872, %v880
        %v889 = vsub.f32 %v873, %v881
        %v890 = vsub.f32 %v874, %v882
        %v891 = vsub.f32 %v875, %v883
        %v892 = vsub.f32 %v876, %v884
        %v893 = vsub.f32 %v877, %v885
        %v894 = vsub.f32 %v878, %v886
        %v895 = vmax.f32 %v887, 0.0
        %v896 = vmax.f32 %v888, 0.0
        %v897 = vmax.f32 %v889, 0.0
        %v898 = vmax.f32 %v890, 0.0
        %v899 = vmax.f32 %v891, 0.0
        %v900 = vmax.f32 %v892, 0.0
        %v901 = vmax.f32 %v893, 0.0
        %v902 = vmax.f32 %v894, 0.0
        %v903 = vsub.f32 %v798, %v863
        %v904 = vsub.f32 %v801, %v864
        %v905 = vsub.f32 %v804, %v865
        %v906 = vsub.f32 %v807, %v866
        %v907 = vsub.f32 %v810, %v867
        %v908 = vsub.f32 %v813, %v868
        %v909 = vsub.f32 %v816, %v869
        %v910 = vsub.f32 %v819, %v870
        %v911 = vadd.f32 %v895, 1e-05
        %v912 = vadd.f32 %v896, 1e-05
        %v913 = vadd.f32 %v897, 1e-05
        %v914 = vadd.f32 %v898, 1e-05
        %v915 = vadd.f32 %v899, 1e-05
        %v916 = vadd.f32 %v900, 1e-05
        %v917 = vadd.f32 %v901, 1e-05
        %v918 = vadd.f32 %v902, 1e-05
        %v919 = vrsqrt.pop %v911
        %v920 = vmul.f32 %v919, %v911
        %v921 = vmul.f32 %v920, %v919
        %v922 = vmul.f32 0.5, %v921
        %v923 = vsub.f32 1.5, %v922
        %v924 = vmul.f32 %v919, %v923
        %vm925 = vweird.f32 %v911
        %vm926 = vweird.f32 %v919
        %vm927 = vmor %vm925, %vm926
        %v928 = vsel %vm927, %v919, %v924
        %v929 = vrsqrt.pop %v912
        %v930 = vmul.f32 %v929, %v912
        %v931 = vmul.f32 %v930, %v929
        %v932 = vmul.f32 0.5, %v931
        %v933 = vsub.f32 1.5, %v932
        %v934 = vmul.f32 %v929, %v933
        %vm935 = vweird.f32 %v912
        %vm936 = vweird.f32 %v929
        %vm937 = vmor %vm935, %vm936
        %v938 = vsel %vm937, %v929, %v934
        %v939 = vrsqrt.pop %v913
        %v940 = vmul.f32 %v939, %v913
        %v941 = vmul.f32 %v940, %v939
        %v942 = vmul.f32 0.5, %v941
        %v943 = vsub.f32 1.5, %v942
        %v944 = vmul.f32 %v939, %v943
        %vm945 = vweird.f32 %v913
        %vm946 = vweird.f32 %v939
        %vm947 = vmor %vm945, %vm946
        %v948 = vsel %vm947, %v939, %v944
        %v949 = vrsqrt.pop %v914
        %v950 = vmul.f32 %v949, %v914
        %v951 = vmul.f32 %v950, %v949
        %v952 = vmul.f32 0.5, %v951
        %v953 = vsub.f32 1.5, %v952
        %v954 = vmul.f32 %v949, %v953
        %vm955 = vweird.f32 %v914
        %vm956 = vweird.f32 %v949
        %vm957 = vmor %vm955, %vm956
        %v958 = vsel %vm957, %v949, %v954
        %v959 = vrsqrt.pop %v915
        %v960 = vmul.f32 %v959, %v915
        %v961 = vmul.f32 %v960, %v959
        %v962 = vmul.f32 0.5, %v961
        %v963 = vsub.f32 1.5, %v962
        %v964 = vmul.f32 %v959, %v963
        %vm965 = vweird.f32 %v915
        %vm966 = vweird.f32 %v959
        %vm967 = vmor %vm965, %vm966
        %v968 = vsel %vm967, %v959, %v964
        %v969 = vrsqrt.pop %v916
        %v970 = vmul.f32 %v969, %v916
        %v971 = vmul.f32 %v970, %v969
        %v972 = vmul.f32 0.5, %v971
        %v973 = vsub.f32 1.5, %v972
        %v974 = vmul.f32 %v969, %v973
        %vm975 = vweird.f32 %v916
        %vm976 = vweird.f32 %v969
        %vm977 = vmor %vm975, %vm976
        %v978 = vsel %vm977, %v969, %v974
        %v979 = vrsqrt.pop %v917
        %v980 = vmul.f32 %v979, %v917
        %v981 = vmul.f32 %v980, %v979
        %v982 = vmul.f32 0.5, %v981
        %v983 = vsub.f32 1.5, %v982
        %v984 = vmul.f32 %v979, %v983
        %vm985 = vweird.f32 %v917
        %vm986 = vweird.f32 %v979
        %vm987 = vmor %vm985, %vm986
        %v988 = vsel %vm987, %v979, %v984
        %v989 = vrsqrt.pop %v918
        %v990 = vmul.f32 %v989, %v918
        %v991 = vmul.f32 %v990, %v989
        %v992 = vmul.f32 0.5, %v991
        %v993 = vsub.f32 1.5, %v992
        %v994 = vmul.f32 %v989, %v993
        %vm995 = vweird.f32 %v918
        %vm996 = vweird.f32 %v989
        %vm997 = vmor %vm995, %vm996
        %v998 = vsel %vm997, %v989, %v994
        %v999 = vmul.f32 %v903, %v928
        %v1000 = vmul.f32 %v904, %v938
        %v1001 = vmul.f32 %v905, %v948
        %v1002 = vmul.f32 %v906, %v958
        %v1003 = vmul.f32 %v907, %v968
        %v1004 = vmul.f32 %v908, %v978
        %v1005 = vmul.f32 %v909, %v988
        %v1006 = vmul.f32 %v910, %v998
        %v1008 = vperm.slane %v821, 0
        %v1010 = vmul.f32 %v999, %v1008
        %v1011 = vmul.f32 %v1000, %v1008
        %v1012 = vmul.f32 %v1001, %v1008
        %v1013 = vmul.f32 %v1002, %v1008
        %v1014 = vmul.f32 %v1003, %v1008
        %v1015 = vmul.f32 %v1004, %v1008
        %v1016 = vmul.f32 %v1005, %v1008
        %v1017 = vmul.f32 %v1006, %v1008
        %v1019 = vperm.slane %v822, 0
        %v1021 = vadd.f32 %v1010, %v1019
        %v1022 = vadd.f32 %v1011, %v1019
        %v1023 = vadd.f32 %v1012, %v1019
        %v1024 = vadd.f32 %v1013, %v1019
        %v1025 = vadd.f32 %v1014, %v1019
        %v1026 = vadd.f32 %v1015, %v1019
        %v1027 = vadd.f32 %v1016, %v1019
        %v1028 = vadd.f32 %v1017, %v1019
        %v1029 = vmul.f32 %v1021, 0.5
        %v1030 = vmul.f32 %v1022, 0.5
        %v1031 = vmul.f32 %v1023, 0.5
        %v1032 = vmul.f32 %v1024, 0.5
        %v1033 = vmul.f32 %v1025, 0.5
        %v1034 = vmul.f32 %v1026, 0.5
        %v1035 = vmul.f32 %v1027, 0.5
        %v1036 = vmul.f32 %v1028, 0.5
        %v1037 = vtanh.pop %v1029
        %v1038 = vtanh.pop %v1030
        %v1039 = vtanh.pop %v1031
        %v1040 = vtanh.pop %v1032
        %v1041 = vtanh.pop %v1033
        %v1042 = vtanh.pop %v1034
        %v1043 = vtanh.pop %v1035
        %v1044 = vtanh.pop %v1036
        %v1045 = vadd.f32 %v1037, 1.0
        %v1046 = vadd.f32 %v1038, 1.0
        %v1047 = vadd.f32 %v1039, 1.0
        %v1048 = vadd.f32 %v1040, 1.0
        %v1049 = vadd.f32 %v1041, 1.0
        %v1050 = vadd.f32 %v1042, 1.0
        %v1051 = vadd.f32 %v1043, 1.0
        %v1052 = vadd.f32 %v1044, 1.0
        %v1053 = vmul.f32 %v1045, 0.5
        %v1054 = vmul.f32 %v1046, 0.5
        %v1055 = vmul.f32 %v1047, 0.5
        %v1056 = vmul.f32 %v1048, 0.5
        %v1057 = vmul.f32 %v1049, 0.5
        %v1058 = vmul.f32 %v1050, 0.5
        %v1059 = vmul.f32 %v1051, 0.5
        %v1060 = vmul.f32 %v1052, 0.5
        %v1061 = vmul.f32 %v1021, %v1053
        %v1062 = vmul.f32 %v1022, %v1054
        %v1063 = vmul.f32 %v1023, %v1055
        %v1064 = vmul.f32 %v1024, %v1056
        %v1065 = vmul.f32 %v1025, %v1057
        %v1066 = vmul.f32 %v1026, %v1058
        %v1067 = vmul.f32 %v1027, %v1059
        %v1068 = vmul.f32 %v1028, %v1060
        %v1069 = vld [vmem:[#allocation2] sm:$0xff]
        %v1070 = vld [vmem:[#allocation2 + $0x8] sm:$0xff]
        %v1071 = vld [vmem:[#allocation2 + $0x10] sm:$0xff]
        %v1072 = vld [vmem:[#allocation2 + $0x18] sm:$0xff]
        %v1073 = vld [vmem:[#allocation2 + $0x20] sm:$0xff]
        %v1074 = vld [vmem:[#allocation2 + $0x28] sm:$0xff]
        %v1075 = vld [vmem:[#allocation2 + $0x30] sm:$0xff]
        %v1076 = vld [vmem:[#allocation2 + $0x38] sm:$0xff]
        %v1077 = vld [vmem:[#allocation2 + $0x40] sm:$0xff]
        %v1078 = vld [vmem:[#allocation2 + $0x48] sm:$0xff]
        %v1079 = vld [vmem:[#allocation2 + $0x50] sm:$0xff]
        %v1080 = vld [vmem:[#allocation2 + $0x58] sm:$0xff]
        %v1081 = vld [vmem:[#allocation2 + $0x60] sm:$0xff]
        %v1082 = vld [vmem:[#allocation2 + $0x68] sm:$0xff]
        %v1083 = vld [vmem:[#allocation2 + $0x70] sm:$0xff]
        %v1084 = vld [vmem:[#allocation2 + $0x78] sm:$0xff]
        %v1085 = vld [vmem:[%s10] sm:$0x1]
        %v1087 = vperm.slane %v1085, 0
        %1089 = vmatpush.msra.mxu0 %v1084
        %1090 = vmatpush.msra.mxu0 %v1083
        %1091 = vmatpush.msra.mxu0 %v1082
        %1092 = vmatpush.msra.mxu0 %v1081
        %1093 = vmatpush.msra.mxu0 %v1080
        %1094 = vmatpush.msra.mxu0 %v1079
        %1095 = vmatpush.msra.mxu0 %v1078
        %1096 = vmatpush.msra.mxu0 %v1077
        %1097 = vmatpush.msra.mxu0 %v1076
        %1098 = vmatpush.msra.mxu0 %v1075
        %1099 = vmatpush.msra.mxu0 %v1074
        %1100 = vmatpush.msra.mxu0 %v1073
        %1101 = vmatpush.msra.mxu0 %v1072
        %1102 = vmatpush.msra.mxu0 %v1071
        %1103 = vmatpush.msra.mxu0 %v1070
        %1104 = vmatpush.msra.mxu0 %v1069
        %1105 = vmatmul.f32.gmra.mxu0 %v1061
        %v1106 = vpop.f32.mrf.mxu0
        %v1107 = vadd.f32 %v1087, %v1106
        %1108 = vmatmul.f32.gmra.mxu0 %v1062
        %v1109 = vpop.f32.mrf.mxu0
        %v1110 = vadd.f32 %v1087, %v1109
        %1111 = vmatmul.f32.gmra.mxu0 %v1063
        %v1112 = vpop.f32.mrf.mxu0
        %v1113 = vadd.f32 %v1087, %v1112
        %1114 = vmatmul.f32.gmra.mxu0 %v1064
        %v1115 = vpop.f32.mrf.mxu0
        %v1116 = vadd.f32 %v1087, %v1115
        %1117 = vmatmul.f32.gmra.mxu0 %v1065
        %v1118 = vpop.f32.mrf.mxu0
        %v1119 = vadd.f32 %v1087, %v1118
        %1120 = vmatmul.f32.gmra.mxu0 %v1066
        %v1121 = vpop.f32.mrf.mxu0
        %v1122 = vadd.f32 %v1087, %v1121
        %1123 = vmatmul.f32.gmra.mxu0 %v1067
        %v1124 = vpop.f32.mrf.mxu0
        %v1125 = vadd.f32 %v1087, %v1124
        %1126 = vmatmul.f32.gmra.mxu0 %v1068
        %v1127 = vpop.f32.mrf.mxu0
        %v1128 = vadd.f32 %v1087, %v1127
        %1129 = vdwg.mxu0
        %1130 = vst [vmem:[%s409] sm:$0xff] %v1107
        %1131 = vst [vmem:[%s409 + $0x8] sm:$0xff] %v1110
        %1132 = vst [vmem:[%s409 + $0x10] sm:$0xff] %v1113
        %1133 = vst [vmem:[%s409 + $0x18] sm:$0xff] %v1116
        %1134 = vst [vmem:[%s409 + $0x20] sm:$0xff] %v1119
        %1135 = vst [vmem:[%s409 + $0x28] sm:$0xff] %v1122
        %1136 = vst [vmem:[%s409 + $0x30] sm:$0xff] %v1125
        %1137 = vst [vmem:[%s409 + $0x38] sm:$0xff] %v1128
        %s1138 = sand.u32 %s270, 1
        %s1139 = scalar_lea.sflag [#allocation4], %s1138
        %s1140 = sand.u32 %s270, 1
        %s1141 = smul.addr %s1140, 64
        %s1142 = scalar_lea.vmem [#allocation5], %s1141
        // Predicated region
        $region69: #{tpu_custom_call.1} parent=63 // pred_check
          %p1143 = pneg %p280
        $region70: #{tpu_custom_call.1} parent=63 // pred_check_branch
          %1145 = sbr.rel (%p1143) target = $region72
        $region71: #{tpu_custom_call.1} parent=63 // pred_region
          %s1146 = smul.u32 8, %s26
          %s1147 = ssub.s32 25, %s1146
          %p1148 = scmp.lt.s32.totalorder %s1147, 8
          %s1149 = scalar_select %p1148, %s1147, 8
          %s1150 = smul.u32 8, %s1149
          %s1151 = ssub.s32 64, %s1150
          %s1152 = sshll.u32 %s1151, 4
          %1153 = vsyncadd %s1139, %s1152
          %p1154 = scmp.ne.s32.totalorder 0, %s1150
          %s1155 = smul.addr %s1146, 8
          %s1156 = scalar_lea.hbm %s11, %s1155
          %s1157 = smul.u32 8, %s1149
          %s1158 = sshll.u32 %s1142, 4
          %s1159 = int_to_ptr.vmem [resolvable:$true] %s1158
          %s1160 = sshll.u32 %s1156, 4
          %s1161 = int_to_ptr.hbm [resolvable:$true] %s1160
          %s1162 = sshll.u32 %s1157, 4
          %1166 = dma.vmem_to_hbm [thread:$0]  (%p1154), %s1159, %s1162, %s1161, %s1139, 128, 128, 8
        $region72: #{tpu_custom_call.1} parent=63 // pred_fallthru
          _
      $region64: #{tpu_custom_call.1} parent=5 // pred_fallthru
        _
      %p1167 = scmp.le.s32.totalorder 2, %s21
      // Predicated region
      $region73: #{tpu_custom_call.1} parent=5 // pred_check
        %p1168 = pneg %p1167
      $region74: #{tpu_custom_call.1} parent=5 // pred_check_branch
        %1170 = sbr.rel (%p1168) target = $region76
      $region75: #{tpu_custom_call.1} parent=5 // pred_region
        %s1171 = ssub.s32 %s21, 2
        // Predicated region
        $region77: #{tpu_custom_call.1} parent=75 // pred_check
          %p1172 = pneg %p286
        $region78: #{tpu_custom_call.1} parent=75 // pred_check_branch
          %1174 = sbr.rel (%p1172) target = $region80
        $region79: #{tpu_custom_call.1} parent=75 // pred_region
          %s1175 = sand.u32 %s271, 1
          %s1176 = scalar_lea.sflag [#allocation4], %s1175
          %s1177 = sand.u32 %s271, 1
          %s1178 = smul.addr %s1177, 64
          %s1179 = scalar_lea.vmem [#allocation5], %s1178
          %1181 = dma.done %s1176, 1024
        $region80: #{tpu_custom_call.1} parent=75 // pred_fallthru
          _
      $region76: #{tpu_custom_call.1} parent=5 // pred_fallthru
        _
    $region6: #{tpu_custom_call.1} parent=1 // loop_footer
      %s25 = sadd.s32 1, %s21
    $region7: #{tpu_custom_call.1} parent=1 // loop_footer_branch
      %20 = sbr.rel target = $region3
    $region8: #{tpu_custom_call.1} parent=1 // loop_exit
      _
    %1182 = vsyncpa [#allocation3], 1
    %s1183 = scalar_lea.sflag [#allocation3], 1
    %1184 = vsyncpa %s1183, 1
    %1185 = vsyncpa [#allocation4], 1
    %s1186 = scalar_lea.sflag [#allocation4], 1
    %1187 = vsyncpa %s1186, 1

// kernel: tpu_custom_call.1
$region0: #{tpu_custom_call.1}
  #allocation0 [shape = 'u32[]', space=smem, size = 0x4, offset = 0x4, fixed_abs, tag = 'smem constant byte address 0x4 - core index']
  #allocation1 [shape = 'u32[72,128]{1,0:T(1,128)}', space=vmem, size = 0x9000, scoped, tag = 'internal scratch']
  %s0 = inlined_call_operand.vmem [shape: f32[200,4], index: 0, kind: input, shape index: {}]
  %s1 = inlined_call_operand.vmem [shape: f32[4,128], index: 1, kind: input, shape index: {}]
  %s2 = inlined_call_operand.vmem [shape: f32[1,128], index: 2, kind: input, shape index: {}]
  %s3 = inlined_call_operand.vmem [shape: f32[1,128], index: 3, kind: input, shape index: {}]
  %s4 = inlined_call_operand.vmem [shape: f32[1,128], index: 4, kind: input, shape index: {}]
  %s5 = inlined_call_operand.vmem [shape: f32[1,128,128], index: 5, kind: input, shape index: {}]
  %s6 = inlined_call_operand.vmem [shape: f32[1,1,128], index: 6, kind: input, shape index: {}]
  %s7 = inlined_call_operand.vmem [shape: f32[1,1,128], index: 7, kind: input, shape index: {}]
  %s8 = inlined_call_operand.vmem [shape: f32[1,1,128], index: 8, kind: input, shape index: {}]
  %s9 = inlined_call_operand.hbm [shape: f32[128,128], index: 9, kind: input, shape index: {}]
  %s10 = inlined_call_operand.vmem [shape: f32[1,128], index: 10, kind: input, shape index: {}]
  %s11 = inlined_call_operand.hbm [shape: f32[200,128], index: 11, kind: output, shape index: {}]
  %s12 = sld [smem:[#allocation0]]
  $region81: #{tpu_custom_call.1} parent=0
    _
  %s14 = ssub.s32 1, %s12
  %s15 = scalar_select 0, %s14, %s12
  $region1: #{tpu_custom_call.1} parent=0
    #allocation2 [shape = 'u8[65536]{0}', space=vmem, size = 0x10000, scoped, tag = 'input window, operand 9, single buffered']
    #allocation3 [shape = 's32[2]{0}', space=sflag, size = 0x8, scoped, tag = 'scoped memory for tpu_custom_call.1']
    #allocation4 [shape = 's32[2]{0}', space=sflag, size = 0x8, scoped, tag = 'scoped memory for tpu_custom_call.1']
    #allocation5 [shape = 'u8[65536]{0}', space=vmem, size = 0x10000, scoped, tag = 'output window, operand 0']
    %16 = vsyncpa [#allocation3], 0
    %17 = vsyncpa [#allocation4], 0
    %s18 = scalar_lea.sflag [#allocation4], 1
    %19 = vsyncpa %s18, 0
    loop: start=0, step=1, limit=6
    $region2: #{tpu_custom_call.1} parent=1 // loop_pre_header
      _
    $region3: #{tpu_custom_call.1} parent=1 // loop_header
      %s21 = sphi 0, %s25
      %p22 = scmp.ge.s32.totalorder %s21, 6
      %s31 = sphi 0, %s33
      %s34 = sphi 0, %s31
      %s35 = sphi 0, %s34
      %s51 = sphi 0, %s35
      %s55 = sphi 0, %s55
      %s57 = sphi 0, %s55
      %s58 = sphi 0, %s57
      %s72 = sphi 0, %s58
      %s76 = sphi 0, %s76
      %s78 = sphi 0, %s76
      %s79 = sphi 0, %s78
      %s93 = sphi 0, %s79
      %s97 = sphi 0, %s97
      %s99 = sphi 0, %s97
      %s100 = sphi 0, %s99
      %s114 = sphi 0, %s100
      %s118 = sphi 0, %s118
      %s120 = sphi 0, %s118
      %s121 = sphi 0, %s120
      %s135 = sphi 0, %s121
      %s139 = sphi 0, %s139
      %s141 = sphi 0, %s139
      %s142 = sphi 0, %s141
      %s156 = sphi 0, %s142
      %s160 = sphi 0, %s160
      %s162 = sphi 0, %s160
      %s163 = sphi 0, %s162
      %s177 = sphi 0, %s163
      %s181 = sphi 0, %s181
      %s183 = sphi 0, %s181
      %s184 = sphi 0, %s183
      %s198 = sphi 0, %s184
      %s202 = sphi 0, %s202
      %s204 = sphi 0, %s202
      %s205 = sphi 0, %s204
      %s219 = sphi 0, %s205
      %s223 = sphi 0, %s223
      %s225 = sphi 0, %s223
      %s226 = sphi 0, %s225
      %s240 = sphi 0, %s226
      %s244 = sphi 0, %s244
      %s246 = sphi 0, %s244
      %s247 = sphi 0, %s246
      %s261 = sphi 0, %s247
      %s267 = sphi 0, %s269
      %s270 = sphi 0, %s267
      %s271 = sphi 0, %s270
      %s287 = sphi 0, %s271
    $region4: #{tpu_custom_call.1} parent=1 // loop_header_branch
      %24 = sbr.rel (%p22) target = $region8
    $region5: #{tpu_custom_call.1} parent=1 // loop_body
      %s26 = ssub.s32 %s21, 1
      %s27 = ssub.s32 %s21, 2
      %s28 = sadd.s32 %s21, 1
      %s29 = ssub.s32 %s21, %s28
      %p30 = scmp.eq.s32.totalorder %s29, 0
      %s32 = sadd.s32 %s31, 1
      %s33 = scalar_select %p30, %s31, %s32
      %p36 = pneg %p30
      %p37 = scmp.eq.s32.totalorder %s21, 3
      %p38 = por %p36, %p37
      %p39 = scmp.ne.s32.totalorder %s31, %s34
      %p40 = scmp.eq.s32.totalorder %s21, 0
      %p41 = por %p39, %p40
      %p42 = scmp.ne.s32.totalorder %s31, %s34
      %p43 = scmp.eq.s32.totalorder %s26, 3
      %p44 = por %p42, %p43
      %p45 = scmp.ne.s32.totalorder %s34, %s35
      %p46 = scmp.eq.s32.totalorder %s26, 0
      %p47 = por %p45, %p46
      %p48 = scmp.ne.s32.totalorder %s34, %s35
      %p49 = scmp.eq.s32.totalorder %s27, 3
      %p50 = por %p48, %p49
      %p52 = scmp.ne.s32.totalorder %s35, %s51
      %p53 = scmp.eq.s32.totalorder %s27, 0
      %p54 = por %p52, %p53
      %s56 = sadd.s32 %s55, 1
      %p59 = scmp.eq.s32.totalorder %s21, 3
      %p60 = scmp.ne.s32.totalorder %s55, %s57
      %p61 = scmp.eq.s32.totalorder %s21, 0
      %p62 = por %p60, %p61
      %p63 = scmp.ne.s32.totalorder %s55, %s57
      %p64 = scmp.eq.s32.totalorder %s26, 3
      %p65 = por %p63, %p64
      %p66 = scmp.ne.s32.totalorder %s57, %s58
      %p67 = scmp.eq.s32.totalorder %s26, 0
      %p68 = por %p66, %p67
      %p69 = scmp.ne.s32.totalorder %s57, %s58
      %p70 = scmp.eq.s32.totalorder %s27, 3
      %p71 = por %p69, %p70
      %p73 = scmp.ne.s32.totalorder %s58, %s72
      %p74 = scmp.eq.s32.totalorder %s27, 0
      %p75 = por %p73, %p74
      %s77 = sadd.s32 %s76, 1
      %p80 = scmp.eq.s32.totalorder %s21, 3
      %p81 = scmp.ne.s32.totalorder %s76, %s78
      %p82 = scmp.eq.s32.totalorder %s21, 0
      %p83 = por %p81, %p82
      %p84 = scmp.ne.s32.totalorder %s76, %s78
      %p85 = scmp.eq.s32.totalorder %s26, 3
      %p86 = por %p84, %p85
      %p87 = scmp.ne.s32.totalorder %s78, %s79
      %p88 = scmp.eq.s32.totalorder %s26, 0
      %p89 = por %p87, %p88
      %p90 = scmp.ne.s32.totalorder %s78, %s79
      %p91 = scmp.eq.s32.totalorder %s27, 3
      %p92 = por %p90, %p91
      %p94 = scmp.ne.s32.totalorder %s79, %s93
      %p95 = scmp.eq.s32.totalorder %s27, 0
      %p96 = por %p94, %p95
      %s98 = sadd.s32 %s97, 1
      %p101 = scmp.eq.s32.totalorder %s21, 3
      %p102 = scmp.ne.s32.totalorder %s97, %s99
      %p103 = scmp.eq.s32.totalorder %s21, 0
      %p104 = por %p102, %p103
      %p105 = scmp.ne.s32.totalorder %s97, %s99
      %p106 = scmp.eq.s32.totalorder %s26, 3
      %p107 = por %p105, %p106
      %p108 = scmp.ne.s32.totalorder %s99, %s100
      %p109 = scmp.eq.s32.totalorder %s26, 0
      %p110 = por %p108, %p109
      %p111 = scmp.ne.s32.totalorder %s99, %s100
      %p112 = scmp.eq.s32.totalorder %s27, 3
      %p113 = por %p111, %p112
      %p115 = scmp.ne.s32.totalorder %s100, %s114
      %p116 = scmp.eq.s32.totalorder %s27, 0
      %p117 = por %p115, %p116
      %s119 = sadd.s32 %s118, 1
      %p122 = scmp.eq.s32.totalorder %s21, 3
      %p123 = scmp.ne.s32.totalorder %s118, %s120
      %p124 = scmp.eq.s32.totalorder %s21, 0
      %p125 = por %p123, %p124
      %p126 = scmp.ne.s32.totalorder %s118, %s120
      %p127 = scmp.eq.s32.totalorder %s26, 3
      %p128 = por %p126, %p127
      %p129 = scmp.ne.s32.totalorder %s120, %s121
      %p130 = scmp.eq.s32.totalorder %s26, 0
      %p131 = por %p129, %p130
      %p132 = scmp.ne.s32.totalorder %s120, %s121
      %p133 = scmp.eq.s32.totalorder %s27, 3
      %p134 = por %p132, %p133
      %p136 = scmp.ne.s32.totalorder %s121, %s135
      %p137 = scmp.eq.s32.totalorder %s27, 0
      %p138 = por %p136, %p137
      %s140 = sadd.s32 %s139, 1
      %p143 = scmp.eq.s32.totalorder %s21, 3
      %p144 = scmp.ne.s32.totalorder %s139, %s141
      %p145 = scmp.eq.s32.totalorder %s21, 0
      %p146 = por %p144, %p145
      %p147 = scmp.ne.s32.totalorder %s139, %s141
      %p148 = scmp.eq.s32.totalorder %s26, 3
      %p149 = por %p147, %p148
      %p150 = scmp.ne.s32.totalorder %s141, %s142
      %p151 = scmp.eq.s32.totalorder %s26, 0
      %p152 = por %p150, %p151
      %p153 = scmp.ne.s32.totalorder %s141, %s142
      %p154 = scmp.eq.s32.totalorder %s27, 3
      %p155 = por %p153, %p154
      %p157 = scmp.ne.s32.totalorder %s142, %s156
      %p158 = scmp.eq.s32.totalorder %s27, 0
      %p159 = por %p157, %p158
      %s161 = sadd.s32 %s160, 1
      %p164 = scmp.eq.s32.totalorder %s21, 3
      %p165 = scmp.ne.s32.totalorder %s160, %s162
      %p166 = scmp.eq.s32.totalorder %s21, 0
      %p167 = por %p165, %p166
      %p168 = scmp.ne.s32.totalorder %s160, %s162
      %p169 = scmp.eq.s32.totalorder %s26, 3
      %p170 = por %p168, %p169
      %p171 = scmp.ne.s32.totalorder %s162, %s163
      %p172 = scmp.eq.s32.totalorder %s26, 0
      %p173 = por %p171, %p172
      %p174 = scmp.ne.s32.totalorder %s162, %s163
      %p175 = scmp.eq.s32.totalorder %s27, 3
      %p176 = por %p174, %p175
      %p178 = scmp.ne.s32.totalorder %s163, %s177
      %p179 = scmp.eq.s32.totalorder %s27, 0
      %p180 = por %p178, %p179
      %s182 = sadd.s32 %s181, 1
      %p185 = scmp.eq.s32.totalorder %s21, 3
      %p186 = scmp.ne.s32.totalorder %s181, %s183
      %p187 = scmp.eq.s32.totalorder %s21, 0
      %p188 = por %p186, %p187
      %p189 = scmp.ne.s32.totalorder %s181, %s183
      %p190 = scmp.eq.s32.totalorder %s26, 3
      %p191 = por %p189, %p190
      %p192 = scmp.ne.s32.totalorder %s183, %s184
      %p193 = scmp.eq.s32.totalorder %s26, 0
      %p194 = por %p192, %p193
      %p195 = scmp.ne.s32.totalorder %s183, %s184
      %p196 = scmp.eq.s32.totalorder %s27, 3
      %p197 = por %p195, %p196
      %p199 = scmp.ne.s32.totalorder %s184, %s198
      %p200 = scmp.eq.s32.totalorder %s27, 0
      %p201 = por %p199, %p200
      %s203 = sadd.s32 %s202, 1
      %p206 = scmp.eq.s32.totalorder %s21, 3
      %p207 = scmp.ne.s32.totalorder %s202, %s204
      %p208 = scmp.eq.s32.totalorder %s21, 0
      %p209 = por %p207, %p208
      %p210 = scmp.ne.s32.totalorder %s202, %s204
      %p211 = scmp.eq.s32.totalorder %s26, 3
      %p212 = por %p210, %p211
      %p213 = scmp.ne.s32.totalorder %s204, %s205
      %p214 = scmp.eq.s32.totalorder %s26, 0
      %p215 = por %p213, %p214
      %p216 = scmp.ne.s32.totalorder %s204, %s205
      %p217 = scmp.eq.s32.totalorder %s27, 3
      %p218 = por %p216, %p217
      %p220 = scmp.ne.s32.totalorder %s205, %s219
      %p221 = scmp.eq.s32.totalorder %s27, 0
      %p222 = por %p220, %p221
      %s224 = sadd.s32 %s223, 1
      %p227 = scmp.eq.s32.totalorder %s21, 3
      %p228 = scmp.ne.s32.totalorder %s223, %s225
      %p229 = scmp.eq.s32.totalorder %s21, 0
      %p230 = por %p228, %p229
      %p231 = scmp.ne.s32.totalorder %s223, %s225
      %p232 = scmp.eq.s32.totalorder %s26, 3
      %p233 = por %p231, %p232
      %p234 = scmp.ne.s32.totalorder %s225, %s226
      %p235 = scmp.eq.s32.totalorder %s26, 0
      %p236 = por %p234, %p235
      %p237 = scmp.ne.s32.totalorder %s225, %s226
      %p238 = scmp.eq.s32.totalorder %s27, 3
      %p239 = por %p237, %p238
      %p241 = scmp.ne.s32.totalorder %s226, %s240
      %p242 = scmp.eq.s32.totalorder %s27, 0
      %p243 = por %p241, %p242
      %s245 = sadd.s32 %s244, 1
      %p248 = scmp.eq.s32.totalorder %s21, 3
      %p249 = scmp.ne.s32.totalorder %s244, %s246
      %p250 = scmp.eq.s32.totalorder %s21, 0
      %p251 = por %p249, %p250
      %p252 = scmp.ne.s32.totalorder %s244, %s246
      %p253 = scmp.eq.s32.totalorder %s26, 3
      %p254 = por %p252, %p253
      %p255 = scmp.ne.s32.totalorder %s246, %s247
      %p256 = scmp.eq.s32.totalorder %s26, 0
      %p257 = por %p255, %p256
      %p258 = scmp.ne.s32.totalorder %s246, %s247
      %p259 = scmp.eq.s32.totalorder %s27, 3
      %p260 = por %p258, %p259
      %p262 = scmp.ne.s32.totalorder %s247, %s261
      %p263 = scmp.eq.s32.totalorder %s27, 0
      %p264 = por %p262, %p263
      %s265 = ssub.s32 %s21, %s28
      %p266 = scmp.eq.s32.totalorder %s265, 0
      %s268 = sadd.s32 %s267, 1
      %s269 = scalar_select %p266, %s267, %s268
      %p272 = pneg %p266
      %p273 = scmp.eq.s32.totalorder %s21, 3
      %p274 = por %p272, %p273
      %p275 = scmp.ne.s32.totalorder %s267, %s270
      %p276 = scmp.eq.s32.totalorder %s21, 0
      %p277 = por %p275, %p276
      %p278 = scmp.ne.s32.totalorder %s267, %s270
      %p279 = scmp.eq.s32.totalorder %s26, 3
      %p280 = por %p278, %p279
      %p281 = scmp.ne.s32.totalorder %s270, %s271
      %p282 = scmp.eq.s32.totalorder %s26, 0
      %p283 = por %p281, %p282
      %p284 = scmp.ne.s32.totalorder %s270, %s271
      %p285 = scmp.eq.s32.totalorder %s27, 3
      %p286 = por %p284, %p285
      %p288 = scmp.ne.s32.totalorder %s271, %s287
      %p289 = scmp.eq.s32.totalorder %s27, 0
      %p290 = por %p288, %p289
      %p291 = scmp.le.s32.totalorder 1, %s21
      %p292 = scmp.lt.s32.totalorder %s21, 5
      %p293 = pnand %p291, %p292
      %p294 = pneg %p293
      // Predicated region
      $region9: #{tpu_custom_call.1} parent=5 // pred_check
        _
      $region10: #{tpu_custom_call.1} parent=5 // pred_check_branch
        %296 = sbr.rel (%p293) target = $region12
      $region11: #{tpu_custom_call.1} parent=5 // pred_region
        %s297 = ssub.s32 %s21, 1
        // Predicated region
        $region13: #{tpu_custom_call.1} parent=11 // pred_check
          %p298 = pneg %p68
        $region14: #{tpu_custom_call.1} parent=11 // pred_check_branch
          %300 = sbr.rel (%p298) target = $region16
        $region15: #{tpu_custom_call.1} parent=11 // pred_region
          _
        $region16: #{tpu_custom_call.1} parent=11 // pred_fallthru
          _
        // Predicated region
        $region17: #{tpu_custom_call.1} parent=11 // pred_check
          %p301 = pneg %p89
        $region18: #{tpu_custom_call.1} parent=11 // pred_check_branch
          %303 = sbr.rel (%p301) target = $region20
        $region19: #{tpu_custom_call.1} parent=11 // pred_region
          _
        $region20: #{tpu_custom_call.1} parent=11 // pred_fallthru
          _
        // Predicated region
        $region21: #{tpu_custom_call.1} parent=11 // pred_check
          %p304 = pneg %p110
        $region22: #{tpu_custom_call.1} parent=11 // pred_check_branch
          %306 = sbr.rel (%p304) target = $region24
        $region23: #{tpu_custom_call.1} parent=11 // pred_region
          _
        $region24: #{tpu_custom_call.1} parent=11 // pred_fallthru
          _
        // Predicated region
        $region25: #{tpu_custom_call.1} parent=11 // pred_check
          %p307 = pneg %p131
        $region26: #{tpu_custom_call.1} parent=11 // pred_check_branch
          %309 = sbr.rel (%p307) target = $region28
        $region27: #{tpu_custom_call.1} parent=11 // pred_region
          _
        $region28: #{tpu_custom_call.1} parent=11 // pred_fallthru
          _
        // Predicated region
        $region29: #{tpu_custom_call.1} parent=11 // pred_check
          %p310 = pneg %p152
        $region30: #{tpu_custom_call.1} parent=11 // pred_check_branch
          %312 = sbr.rel (%p310) target = $region32
        $region31: #{tpu_custom_call.1} parent=11 // pred_region
          _
        $region32: #{tpu_custom_call.1} parent=11 // pred_fallthru
          _
        // Predicated region
        $region33: #{tpu_custom_call.1} parent=11 // pred_check
          %p313 = pneg %p173
        $region34: #{tpu_custom_call.1} parent=11 // pred_check_branch
          %315 = sbr.rel (%p313) target = $region36
        $region35: #{tpu_custom_call.1} parent=11 // pred_region
          _
        $region36: #{tpu_custom_call.1} parent=11 // pred_fallthru
          _
        // Predicated region
        $region37: #{tpu_custom_call.1} parent=11 // pred_check
          %p316 = pneg %p194
        $region38: #{tpu_custom_call.1} parent=11 // pred_check_branch
          %318 = sbr.rel (%p316) target = $region40
        $region39: #{tpu_custom_call.1} parent=11 // pred_region
          _
        $region40: #{tpu_custom_call.1} parent=11 // pred_fallthru
          _
        // Predicated region
        $region41: #{tpu_custom_call.1} parent=11 // pred_check
          %p319 = pneg %p215
        $region42: #{tpu_custom_call.1} parent=11 // pred_check_branch
          %321 = sbr.rel (%p319) target = $region44
        $region43: #{tpu_custom_call.1} parent=11 // pred_region
          _
        $region44: #{tpu_custom_call.1} parent=11 // pred_fallthru
          _
        // Predicated region
        $region45: #{tpu_custom_call.1} parent=11 // pred_check
          %p322 = pneg %p236
        $region46: #{tpu_custom_call.1} parent=11 // pred_check_branch
          %324 = sbr.rel (%p322) target = $region48
        $region47: #{tpu_custom_call.1} parent=11 // pred_region
          %326 = vsyncadd [#allocation3], 0
          %s327 = sshll.u32 %s9, 4
          %s328 = int_to_ptr.hbm [resolvable:$true] %s327
          %s329 = sshll.u32 [#allocation2], 4
          %s330 = int_to_ptr.vmem [resolvable:$true] %s329
          %335 = dma.hbm_to_vmem [thread:$0]  %s328, 2048, %s330, [#allocation3], 128, 128, 8
        $region48: #{tpu_custom_call.1} parent=11 // pred_fallthru
          _
        // Predicated region
        $region49: #{tpu_custom_call.1} parent=11 // pred_check
          %p336 = pneg %p257
        $region50: #{tpu_custom_call.1} parent=11 // pred_check_branch
          %338 = sbr.rel (%p336) target = $region52
        $region51: #{tpu_custom_call.1} parent=11 // pred_region
          _
        $region52: #{tpu_custom_call.1} parent=11 // pred_fallthru
          _
      $region12: #{tpu_custom_call.1} parent=5 // pred_fallthru
        _
      %p339 = scmp.lt.s32.totalorder %s21, 4
      // Predicated region
      $region53: #{tpu_custom_call.1} parent=5 // pred_check
        %p340 = pneg %p339
      $region54: #{tpu_custom_call.1} parent=5 // pred_check_branch
        %342 = sbr.rel (%p340) target = $region56
      $region55: #{tpu_custom_call.1} parent=5 // pred_region
        // Predicated region
        $region57: #{tpu_custom_call.1} parent=55 // pred_check
          %p343 = pneg %p41
        $region58: #{tpu_custom_call.1} parent=55 // pred_check_branch
          %345 = sbr.rel (%p343) target = $region60
        $region59: #{tpu_custom_call.1} parent=55 // pred_region
          %s346 = smul.u32 8, %s21
          %s347 = ssub.s32 25, %s346
          %p348 = scmp.lt.s32.totalorder %s347, 8
          %s349 = scalar_select %p348, %s347, 8
          %s350 = smul.u32 8, %s349
          %p351 = scmp.lt.s32.totalorder %s346, 24
          %s352 = scalar_select %p351, %s346, 24
          %s353 = smul.addr %s352, 8
          %s354 = scalar_lea.vmem %s0, %s353
          %s355 = smul.u32 8, %s21
          %s356 = ssub.s32 25, %s355
          %p357 = scmp.lt.s32.totalorder %s356, 8
          %s358 = scalar_select %p357, %s356, 8
          %s359 = smul.u32 8, %s358
        $region60: #{tpu_custom_call.1} parent=55 // pred_fallthru
          _
      $region56: #{tpu_custom_call.1} parent=5 // pred_fallthru
        _
      %p360 = scmp.le.s32.totalorder 1, %s21
      %p361 = scmp.lt.s32.totalorder %s21, 5
      %p362 = pnand %p360, %p361
      %p363 = pneg %p362
      // Predicated region
      $region61: #{tpu_custom_call.1} parent=5 // pred_check
        _
      $region62: #{tpu_custom_call.1} parent=5 // pred_check_branch
        %365 = sbr.rel (%p362) target = $region64
      $region63: #{tpu_custom_call.1} parent=5 // pred_region
        %s366 = ssub.s32 %s21, 1
        // Predicated region
        $region65: #{tpu_custom_call.1} parent=63 // pred_check
          %p367 = pneg %p236
        $region66: #{tpu_custom_call.1} parent=63 // pred_check_branch
          %369 = sbr.rel (%p367) target = $region68
        $region67: #{tpu_custom_call.1} parent=63 // pred_region
          %371 = dma.done [#allocation3], 2048
        $region68: #{tpu_custom_call.1} parent=63 // pred_fallthru
          _
        %s372 = smul.u32 8, %s26
        %s373 = ssub.s32 25, %s372
        %p374 = scmp.lt.s32.totalorder %s373, 8
        %s375 = scalar_select %p374, %s373, 8
        %s376 = smul.u32 8, %s375
        %p377 = scmp.lt.s32.totalorder %s372, 24
        %s378 = scalar_select %p377, %s372, 24
        %s379 = smul.addr %s378, 8
        %s380 = scalar_lea.vmem %s0, %s379
        %p381 = pneg %p47
        %p382 = pneg %p44
        %p383 = pneg %p68
        %p384 = pneg %p65
        %p385 = pneg %p89
        %p386 = pneg %p86
        %p387 = pneg %p110
        %p388 = pneg %p107
        %p389 = pneg %p131
        %p390 = pneg %p128
        %p391 = pneg %p152
        %p392 = pneg %p149
        %p393 = pneg %p173
        %p394 = pneg %p170
        %p395 = pneg %p194
        %p396 = pneg %p191
        %p397 = pneg %p215
        %p398 = pneg %p212
        %p399 = pneg %p236
        %p400 = pneg %p233
        %p401 = pneg %p257
        %p402 = pneg %p254
        %p403 = pneg %p283
        %p404 = pneg %p280
        %s405 = sand.u32 %s270, 1
        %s406 = scalar_lea.sflag [#allocation4], %s405
        %s407 = sand.u32 %s270, 1
        %s408 = smul.addr %s407, 64
        %s409 = scalar_lea.vmem [#allocation5], %s408
        %s410 = smul.u32 8, %s26
        %s411 = ssub.s32 25, %s410
        %p412 = scmp.lt.s32.totalorder %s411, 8
        %s413 = scalar_select %p412, %s411, 8
        %s414 = smul.u32 8, %s413
        %p415 = scmp.lt.s32.totalorder %s410, 24
        %s416 = scalar_select %p415, %s410, 24
        %s417 = smul.addr %s416, 8
        %s418 = scalar_lea.vmem %s0, %s417
        %s419 = smul.u32 8, %s26
        %s420 = ssub.s32 25, %s419
        %p421 = scmp.lt.s32.totalorder %s420, 8
        %s422 = scalar_select %p421, %s420, 8
        %s423 = smul.u32 8, %s422
        %s424 = smul.u32 8, %s26
        %s425 = ssub.s32 25, %s424
        %p426 = scmp.lt.s32.totalorder %s425, 8
        %s427 = scalar_select %p426, %s425, 8
        %s428 = smul.u32 8, %s427
        %v429 = vld [vmem:[%s418] sm:$0xff]
        %v430 = vld [vmem:[%s418 + $0x8] sm:$0xff]
        %v431 = vld [vmem:[%s418 + $0x10] sm:$0xff]
        %v432 = vld [vmem:[%s418 + $0x18] sm:$0xff]
        %v433 = vld [vmem:[%s418 + $0x20] sm:$0xff]
        %v434 = vld [vmem:[%s418 + $0x28] sm:$0xff]
        %v435 = vld [vmem:[%s418 + $0x30] sm:$0xff]
        %v436 = vld [vmem:[%s418 + $0x38] sm:$0xff]
        %v437 = vld [vmem:[%s1] sm:$0xf]
        %v438 = vld [vmem:[%s2] sm:$0x1]
        %v440 = vperm.slane %v438, 0
        %vm442 = vcmask 31744
        %v444 = vsel %vm442, %v429, 0
        %v447 = vsel %vm442, %v430, 0
        %v450 = vsel %vm442, %v431, 0
        %v453 = vsel %vm442, %v432, 0
        %v456 = vsel %vm442, %v433, 0
        %v459 = vsel %vm442, %v434, 0
        %v462 = vsel %vm442, %v435, 0
        %v465 = vsel %vm442, %v436, 0
        %vm467 = vcmask 1043456
        %v469 = vsel %vm467, %v437, 0
        %471 = vmatpush.msra.mxu0 0.0
        %472 = vmatpush.msra.mxu0 0.0
        %473 = vmatpush.msra.mxu0 0.0
        %474 = vmatpush.msra.mxu0 0.0
        %475 = vmatpush.msra.mxu0 0.0
        %476 = vmatpush.msra.mxu0 0.0
        %477 = vmatpush.msra.mxu0 0.0
        %478 = vmatpush.msra.mxu0 0.0
        %479 = vmatpush.msra.mxu0 0.0
        %480 = vmatpush.msra.mxu0 0.0
        %481 = vmatpush.msra.mxu0 0.0
        %482 = vmatpush.msra.mxu0 0.0
        %483 = vmatpush.msra.mxu0 0.0
        %484 = vmatpush.msra.mxu0 0.0
        %485 = vmatpush.msra.mxu0 0.0
        %486 = vmatpush.msra.mxu0 %v469
        %487 = vmatmul.f32.gmra.mxu0 %v444
        %v488 = vpop.f32.mrf.mxu0
        %v489 = vadd.f32 %v440, %v488
        %490 = vmatmul.f32.gmra.mxu0 %v447
        %v491 = vpop.f32.mrf.mxu0
        %v492 = vadd.f32 %v440, %v491
        %493 = vmatmul.f32.gmra.mxu0 %v450
        %v494 = vpop.f32.mrf.mxu0
        %v495 = vadd.f32 %v440, %v494
        %496 = vmatmul.f32.gmra.mxu0 %v453
        %v497 = vpop.f32.mrf.mxu0
        %v498 = vadd.f32 %v440, %v497
        %499 = vmatmul.f32.gmra.mxu0 %v456
        %v500 = vpop.f32.mrf.mxu0
        %v501 = vadd.f32 %v440, %v500
        %502 = vmatmul.f32.gmra.mxu0 %v459
        %v503 = vpop.f32.mrf.mxu0
        %v504 = vadd.f32 %v440, %v503
        %505 = vmatmul.f32.gmra.mxu0 %v462
        %v506 = vpop.f32.mrf.mxu0
        %v507 = vadd.f32 %v440, %v506
        %508 = vmatmul.f32.gmra.mxu0 %v465
        %v509 = vpop.f32.mrf.mxu0
        %v510 = vadd.f32 %v440, %v509
        %511 = vdwg.mxu0
        %v512 = vld [vmem:[%s3] sm:$0x1]
        %v513 = vld [vmem:[%s4] sm:$0x1]
        %514 = vadd.xlane.f32.xlu0 %v489
        %v515 = vpop.xlane.xlu0 %514
        %516 = vadd.xlane.f32.xlu0 %v492
        %v517 = vpop.xlane.xlu0 %516
        %518 = vadd.xlane.f32.xlu0 %v495
        %v519 = vpop.xlane.xlu0 %518
        %520 = vadd.xlane.f32.xlu0 %v498
        %v521 = vpop.xlane.xlu0 %520
        %522 = vadd.xlane.f32.xlu0 %v501
        %v523 = vpop.xlane.xlu0 %522
        %524 = vadd.xlane.f32.xlu0 %v504
        %v525 = vpop.xlane.xlu0 %524
        %526 = vadd.xlane.f32.xlu0 %v507
        %v527 = vpop.xlane.xlu0 %526
        %528 = vadd.xlane.f32.xlu0 %v510
        %v529 = vpop.xlane.xlu0 %528
        %v530 = vmul.f32 %v489, %v489
        %v531 = vmul.f32 %v492, %v492
        %v532 = vmul.f32 %v495, %v495
        %v533 = vmul.f32 %v498, %v498
        %v534 = vmul.f32 %v501, %v501
        %v535 = vmul.f32 %v504, %v504
        %v536 = vmul.f32 %v507, %v507
        %v537 = vmul.f32 %v510, %v510
        %538 = vadd.xlane.f32.xlu0 %v530
        %v539 = vpop.xlane.xlu0 %538
        %540 = vadd.xlane.f32.xlu0 %v531
        %v541 = vpop.xlane.xlu0 %540
        %542 = vadd.xlane.f32.xlu0 %v532
        %v543 = vpop.xlane.xlu0 %542
        %544 = vadd.xlane.f32.xlu0 %v533
        %v545 = vpop.xlane.xlu0 %544
        %546 = vadd.xlane.f32.xlu0 %v534
        %v547 = vpop.xlane.xlu0 %546
        %548 = vadd.xlane.f32.xlu0 %v535
        %v549 = vpop.xlane.xlu0 %548
        %550 = vadd.xlane.f32.xlu0 %v536
        %v551 = vpop.xlane.xlu0 %550
        %552 = vadd.xlane.f32.xlu0 %v537
        %v553 = vpop.xlane.xlu0 %552
        %v554 = vmul.f32 %v515, 0.03125
        %v555 = vmul.f32 %v517, 0.03125
        %v556 = vmul.f32 %v519, 0.03125
        %v557 = vmul.f32 %v521, 0.03125
        %v558 = vmul.f32 %v523, 0.03125
        %v559 = vmul.f32 %v525, 0.03125
        %v560 = vmul.f32 %v527, 0.03125
        %v561 = vmul.f32 %v529, 0.03125
        %v562 = vmul.f32 %v539, 0.03125
        %v563 = vmul.f32 %v541, 0.03125
        %v564 = vmul.f32 %v543, 0.03125
        %v565 = vmul.f32 %v545, 0.03125
        %v566 = vmul.f32 %v547, 0.03125
        %v567 = vmul.f32 %v549, 0.03125
        %v568 = vmul.f32 %v551, 0.03125
        %v569 = vmul.f32 %v553, 0.03125
        %v570 = vmul.f32 %v554, %v554
        %v571 = vmul.f32 %v555, %v555
        %v572 = vmul.f32 %v556, %v556
        %v573 = vmul.f32 %v557, %v557
        %v574 = vmul.f32 %v558, %v558
        %v575 = vmul.f32 %v559, %v559
        %v576 = vmul.f32 %v560, %v560
        %v577 = vmul.f32 %v561, %v561
        %v578 = vsub.f32 %v562, %v570
        %v579 = vsub.f32 %v563, %v571
        %v580 = vsub.f32 %v564, %v572
        %v581 = vsub.f32 %v565, %v573
        %v582 = vsub.f32 %v566, %v574
        %v583 = vsub.f32 %v567, %v575
        %v584 = vsub.f32 %v568, %v576
        %v585 = vsub.f32 %v569, %v577
        %v586 = vmax.f32 %v578, 0.0
        %v587 = vmax.f32 %v579, 0.0
        %v588 = vmax.f32 %v580, 0.0
        %v589 = vmax.f32 %v581, 0.0
        %v590 = vmax.f32 %v582, 0.0
        %v591 = vmax.f32 %v583, 0.0
        %v592 = vmax.f32 %v584, 0.0
        %v593 = vmax.f32 %v585, 0.0
        %v594 = vsub.f32 %v489, %v554
        %v595 = vsub.f32 %v492, %v555
        %v596 = vsub.f32 %v495, %v556
        %v597 = vsub.f32 %v498, %v557
        %v598 = vsub.f32 %v501, %v558
        %v599 = vsub.f32 %v504, %v559
        %v600 = vsub.f32 %v507, %v560
        %v601 = vsub.f32 %v510, %v561
        %v602 = vadd.f32 %v586, 1e-05
        %v603 = vadd.f32 %v587, 1e-05
        %v604 = vadd.f32 %v588, 1e-05
        %v605 = vadd.f32 %v589, 1e-05
        %v606 = vadd.f32 %v590, 1e-05
        %v607 = vadd.f32 %v591, 1e-05
        %v608 = vadd.f32 %v592, 1e-05
        %v609 = vadd.f32 %v593, 1e-05
        %v610 = vrsqrt.pop %v602
        %v611 = vmul.f32 %v610, %v602
        %v612 = vmul.f32 %v611, %v610
        %v613 = vmul.f32 0.5, %v612
        %v614 = vsub.f32 1.5, %v613
        %v615 = vmul.f32 %v610, %v614
        %vm616 = vweird.f32 %v602
        %vm617 = vweird.f32 %v610
        %vm618 = vmor %vm616, %vm617
        %v619 = vsel %vm618, %v610, %v615
        %v620 = vrsqrt.pop %v603
        %v621 = vmul.f32 %v620, %v603
        %v622 = vmul.f32 %v621, %v620
        %v623 = vmul.f32 0.5, %v622
        %v624 = vsub.f32 1.5, %v623
        %v625 = vmul.f32 %v620, %v624
        %vm626 = vweird.f32 %v603
        %vm627 = vweird.f32 %v620
        %vm628 = vmor %vm626, %vm627
        %v629 = vsel %vm628, %v620, %v625
        %v630 = vrsqrt.pop %v604
        %v631 = vmul.f32 %v630, %v604
        %v632 = vmul.f32 %v631, %v630
        %v633 = vmul.f32 0.5, %v632
        %v634 = vsub.f32 1.5, %v633
        %v635 = vmul.f32 %v630, %v634
        %vm636 = vweird.f32 %v604
        %vm637 = vweird.f32 %v630
        %vm638 = vmor %vm636, %vm637
        %v639 = vsel %vm638, %v630, %v635
        %v640 = vrsqrt.pop %v605
        %v641 = vmul.f32 %v640, %v605
        %v642 = vmul.f32 %v641, %v640
        %v643 = vmul.f32 0.5, %v642
        %v644 = vsub.f32 1.5, %v643
        %v645 = vmul.f32 %v640, %v644
        %vm646 = vweird.f32 %v605
        %vm647 = vweird.f32 %v640
        %vm648 = vmor %vm646, %vm647
        %v649 = vsel %vm648, %v640, %v645
        %v650 = vrsqrt.pop %v606
        %v651 = vmul.f32 %v650, %v606
        %v652 = vmul.f32 %v651, %v650
        %v653 = vmul.f32 0.5, %v652
        %v654 = vsub.f32 1.5, %v653
        %v655 = vmul.f32 %v650, %v654
        %vm656 = vweird.f32 %v606
        %vm657 = vweird.f32 %v650
        %vm658 = vmor %vm656, %vm657
        %v659 = vsel %vm658, %v650, %v655
        %v660 = vrsqrt.pop %v607
        %v661 = vmul.f32 %v660, %v607
        %v662 = vmul.f32 %v661, %v660
        %v663 = vmul.f32 0.5, %v662
        %v664 = vsub.f32 1.5, %v663
        %v665 = vmul.f32 %v660, %v664
        %vm666 = vweird.f32 %v607
        %vm667 = vweird.f32 %v660
        %vm668 = vmor %vm666, %vm667
        %v669 = vsel %vm668, %v660, %v665
        %v670 = vrsqrt.pop %v608
        %v671 = vmul.f32 %v670, %v608
        %v672 = vmul.f32 %v671, %v670
        %v673 = vmul.f32 0.5, %v672
        %v674 = vsub.f32 1.5, %v673
        %v675 = vmul.f32 %v670, %v674
        %vm676 = vweird.f32 %v608
        %vm677 = vweird.f32 %v670
        %vm678 = vmor %vm676, %vm677
        %v679 = vsel %vm678, %v670, %v675
        %v680 = vrsqrt.pop %v609
        %v681 = vmul.f32 %v680, %v609
        %v682 = vmul.f32 %v681, %v680
        %v683 = vmul.f32 0.5, %v682
        %v684 = vsub.f32 1.5, %v683
        %v685 = vmul.f32 %v680, %v684
        %vm686 = vweird.f32 %v609
        %vm687 = vweird.f32 %v680
        %vm688 = vmor %vm686, %vm687
        %v689 = vsel %vm688, %v680, %v685
        %v690 = vmul.f32 %v594, %v619
        %v691 = vmul.f32 %v595, %v629
        %v692 = vmul.f32 %v596, %v639
        %v693 = vmul.f32 %v597, %v649
        %v694 = vmul.f32 %v598, %v659
        %v695 = vmul.f32 %v599, %v669
        %v696 = vmul.f32 %v600, %v679
        %v697 = vmul.f32 %v601, %v689
        %v699 = vperm.slane %v512, 0
        %v701 = vmul.f32 %v690, %v699
        %v702 = vmul.f32 %v691, %v699
        %v703 = vmul.f32 %v692, %v699
        %v704 = vmul.f32 %v693, %v699
        %v705 = vmul.f32 %v694, %v699
        %v706 = vmul.f32 %v695, %v699
        %v707 = vmul.f32 %v696, %v699
        %v708 = vmul.f32 %v697, %v699
        %v710 = vperm.slane %v513, 0
        %v712 = vadd.f32 %v701, %v710
        %v713 = vadd.f32 %v702, %v710
        %v714 = vadd.f32 %v703, %v710
        %v715 = vadd.f32 %v704, %v710
        %v716 = vadd.f32 %v705, %v710
        %v717 = vadd.f32 %v706, %v710
        %v718 = vadd.f32 %v707, %v710
        %v719 = vadd.f32 %v708, %v710
        %v720 = vmul.f32 %v712, 0.5
        %v721 = vmul.f32 %v713, 0.5
        %v722 = vmul.f32 %v714, 0.5
        %v723 = vmul.f32 %v715, 0.5
        %v724 = vmul.f32 %v716, 0.5
        %v725 = vmul.f32 %v717, 0.5
        %v726 = vmul.f32 %v718, 0.5
        %v727 = vmul.f32 %v719, 0.5
        %v728 = vtanh.pop %v720
        %v729 = vtanh.pop %v721
        %v730 = vtanh.pop %v722
        %v731 = vtanh.pop %v723
        %v732 = vtanh.pop %v724
        %v733 = vtanh.pop %v725
        %v734 = vtanh.pop %v726
        %v735 = vtanh.pop %v727
        %v736 = vadd.f32 %v728, 1.0
        %v737 = vadd.f32 %v729, 1.0
        %v738 = vadd.f32 %v730, 1.0
        %v739 = vadd.f32 %v731, 1.0
        %v740 = vadd.f32 %v732, 1.0
        %v741 = vadd.f32 %v733, 1.0
        %v742 = vadd.f32 %v734, 1.0
        %v743 = vadd.f32 %v735, 1.0
        %v744 = vmul.f32 %v736, 0.5
        %v745 = vmul.f32 %v737, 0.5
        %v746 = vmul.f32 %v738, 0.5
        %v747 = vmul.f32 %v739, 0.5
        %v748 = vmul.f32 %v740, 0.5
        %v749 = vmul.f32 %v741, 0.5
        %v750 = vmul.f32 %v742, 0.5
        %v751 = vmul.f32 %v743, 0.5
        %v752 = vmul.f32 %v712, %v744
        %v753 = vmul.f32 %v713, %v745
        %v754 = vmul.f32 %v714, %v746
        %v755 = vmul.f32 %v715, %v747
        %v756 = vmul.f32 %v716, %v748
        %v757 = vmul.f32 %v717, %v749
        %v758 = vmul.f32 %v718, %v750
        %v759 = vmul.f32 %v719, %v751
        %v760 = vld [vmem:[%s5] sm:$0xff]
        %v761 = vld [vmem:[%s5 + $0x8] sm:$0xff]
        %v762 = vld [vmem:[%s5 + $0x10] sm:$0xff]
        %v763 = vld [vmem:[%s5 + $0x18] sm:$0xff]
        %v764 = vld [vmem:[%s5 + $0x20] sm:$0xff]
        %v765 = vld [vmem:[%s5 + $0x28] sm:$0xff]
        %v766 = vld [vmem:[%s5 + $0x30] sm:$0xff]
        %v767 = vld [vmem:[%s5 + $0x38] sm:$0xff]
        %v768 = vld [vmem:[%s5 + $0x40] sm:$0xff]
        %v769 = vld [vmem:[%s5 + $0x48] sm:$0xff]
        %v770 = vld [vmem:[%s5 + $0x50] sm:$0xff]
        %v771 = vld [vmem:[%s5 + $0x58] sm:$0xff]
        %v772 = vld [vmem:[%s5 + $0x60] sm:$0xff]
        %v773 = vld [vmem:[%s5 + $0x68] sm:$0xff]
        %v774 = vld [vmem:[%s5 + $0x70] sm:$0xff]
        %v775 = vld [vmem:[%s5 + $0x78] sm:$0xff]
        %v776 = vld [vmem:[%s6] sm:$0x1]
        %v778 = vperm.slane %v776, 0
        %780 = vmatpush.msra.mxu0 %v775
        %781 = vmatpush.msra.mxu0 %v774
        %782 = vmatpush.msra.mxu0 %v773
        %783 = vmatpush.msra.mxu0 %v772
        %784 = vmatpush.msra.mxu0 %v771
        %785 = vmatpush.msra.mxu0 %v770
        %786 = vmatpush.msra.mxu0 %v769
        %787 = vmatpush.msra.mxu0 %v768
        %788 = vmatpush.msra.mxu0 %v767
        %789 = vmatpush.msra.mxu0 %v766
        %790 = vmatpush.msra.mxu0 %v765
        %791 = vmatpush.msra.mxu0 %v764
        %792 = vmatpush.msra.mxu0 %v763
        %793 = vmatpush.msra.mxu0 %v762
        %794 = vmatpush.msra.mxu0 %v761
        %795 = vmatpush.msra.mxu0 %v760
        %796 = vmatmul.f32.gmra.mxu0 %v752
        %v797 = vpop.f32.mrf.mxu0
        %v798 = vadd.f32 %v778, %v797
        %799 = vmatmul.f32.gmra.mxu0 %v753
        %v800 = vpop.f32.mrf.mxu0
        %v801 = vadd.f32 %v778, %v800
        %802 = vmatmul.f32.gmra.mxu0 %v754
        %v803 = vpop.f32.mrf.mxu0
        %v804 = vadd.f32 %v778, %v803
        %805 = vmatmul.f32.gmra.mxu0 %v755
        %v806 = vpop.f32.mrf.mxu0
        %v807 = vadd.f32 %v778, %v806
        %808 = vmatmul.f32.gmra.mxu0 %v756
        %v809 = vpop.f32.mrf.mxu0
        %v810 = vadd.f32 %v778, %v809
        %811 = vmatmul.f32.gmra.mxu0 %v757
        %v812 = vpop.f32.mrf.mxu0
        %v813 = vadd.f32 %v778, %v812
        %814 = vmatmul.f32.gmra.mxu0 %v758
        %v815 = vpop.f32.mrf.mxu0
        %v816 = vadd.f32 %v778, %v815
        %817 = vmatmul.f32.gmra.mxu0 %v759
        %v818 = vpop.f32.mrf.mxu0
        %v819 = vadd.f32 %v778, %v818
        %820 = vdwg.mxu0
        %v821 = vld [vmem:[%s7] sm:$0x1]
        %v822 = vld [vmem:[%s8] sm:$0x1]
        %823 = vadd.xlane.f32.xlu0 %v798
        %v824 = vpop.xlane.xlu0 %823
        %825 = vadd.xlane.f32.xlu0 %v801
        %v826 = vpop.xlane.xlu0 %825
        %827 = vadd.xlane.f32.xlu0 %v804
        %v828 = vpop.xlane.xlu0 %827
        %829 = vadd.xlane.f32.xlu0 %v807
        %v830 = vpop.xlane.xlu0 %829
        %831 = vadd.xlane.f32.xlu0 %v810
        %v832 = vpop.xlane.xlu0 %831
        %833 = vadd.xlane.f32.xlu0 %v813
        %v834 = vpop.xlane.xlu0 %833
        %835 = vadd.xlane.f32.xlu0 %v816
        %v836 = vpop.xlane.xlu0 %835
        %837 = vadd.xlane.f32.xlu0 %v819
        %v838 = vpop.xlane.xlu0 %837
        %v839 = vmul.f32 %v798, %v798
        %v840 = vmul.f32 %v801, %v801
        %v841 = vmul.f32 %v804, %v804
        %v842 = vmul.f32 %v807, %v807
        %v843 = vmul.f32 %v810, %v810
        %v844 = vmul.f32 %v813, %v813
        %v845 = vmul.f32 %v816, %v816
        %v846 = vmul.f32 %v819, %v819
        %847 = vadd.xlane.f32.xlu0 %v839
        %v848 = vpop.xlane.xlu0 %847
        %849 = vadd.xlane.f32.xlu0 %v840
        %v850 = vpop.xlane.xlu0 %849
        %851 = vadd.xlane.f32.xlu0 %v841
        %v852 = vpop.xlane.xlu0 %851
        %853 = vadd.xlane.f32.xlu0 %v842
        %v854 = vpop.xlane.xlu0 %853
        %855 = vadd.xlane.f32.xlu0 %v843
        %v856 = vpop.xlane.xlu0 %855
        %857 = vadd.xlane.f32.xlu0 %v844
        %v858 = vpop.xlane.xlu0 %857
        %859 = vadd.xlane.f32.xlu0 %v845
        %v860 = vpop.xlane.xlu0 %859
        %861 = vadd.xlane.f32.xlu0 %v846
        %v862 = vpop.xlane.xlu0 %861
        %v863 = vmul.f32 %v824, 0.03125
        %v864 = vmul.f32 %v826, 0.03125
        %v865 = vmul.f32 %v828, 0.03125
        %v866 = vmul.f32 %v830, 0.03125
        %v867 = vmul.f32 %v832, 0.03125
        %v868 = vmul.f32 %v834, 0.03125
        %v869 = vmul.f32 %v836, 0.03125
        %v870 = vmul.f32 %v838, 0.03125
        %v871 = vmul.f32 %v848, 0.03125
        %v872 = vmul.f32 %v850, 0.03125
        %v873 = vmul.f32 %v852, 0.03125
        %v874 = vmul.f32 %v854, 0.03125
        %v875 = vmul.f32 %v856, 0.03125
        %v876 = vmul.f32 %v858, 0.03125
        %v877 = vmul.f32 %v860, 0.03125
        %v878 = vmul.f32 %v862, 0.03125
        %v879 = vmul.f32 %v863, %v863
        %v880 = vmul.f32 %v864, %v864
        %v881 = vmul.f32 %v865, %v865
        %v882 = vmul.f32 %v866, %v866
        %v883 = vmul.f32 %v867, %v867
        %v884 = vmul.f32 %v868, %v868
        %v885 = vmul.f32 %v869, %v869
        %v886 = vmul.f32 %v870, %v870
        %v887 = vsub.f32 %v871, %v879
        %v888 = vsub.f32 %v872, %v880
        %v889 = vsub.f32 %v873, %v881
        %v890 = vsub.f32 %v874, %v882
        %v891 = vsub.f32 %v875, %v883
        %v892 = vsub.f32 %v876, %v884
        %v893 = vsub.f32 %v877, %v885
        %v894 = vsub.f32 %v878, %v886
        %v895 = vmax.f32 %v887, 0.0
        %v896 = vmax.f32 %v888, 0.0
        %v897 = vmax.f32 %v889, 0.0
        %v898 = vmax.f32 %v890, 0.0
        %v899 = vmax.f32 %v891, 0.0
        %v900 = vmax.f32 %v892, 0.0
        %v901 = vmax.f32 %v893, 0.0
        %v902 = vmax.f32 %v894, 0.0
        %v903 = vsub.f32 %v798, %v863
        %v904 = vsub.f32 %v801, %v864
        %v905 = vsub.f32 %v804, %v865
        %v906 = vsub.f32 %v807, %v866
        %v907 = vsub.f32 %v810, %v867
        %v908 = vsub.f32 %v813, %v868
        %v909 = vsub.f32 %v816, %v869
        %v910 = vsub.f32 %v819, %v870
        %v911 = vadd.f32 %v895, 1e-05
        %v912 = vadd.f32 %v896, 1e-05
        %v913 = vadd.f32 %v897, 1e-05
        %v914 = vadd.f32 %v898, 1e-05
        %v915 = vadd.f32 %v899, 1e-05
        %v916 = vadd.f32 %v900, 1e-05
        %v917 = vadd.f32 %v901, 1e-05
        %v918 = vadd.f32 %v902, 1e-05
        %v919 = vrsqrt.pop %v911
        %v920 = vmul.f32 %v919, %v911
        %v921 = vmul.f32 %v920, %v919
        %v922 = vmul.f32 0.5, %v921
        %v923 = vsub.f32 1.5, %v922
        %v924 = vmul.f32 %v919, %v923
        %vm925 = vweird.f32 %v911
        %vm926 = vweird.f32 %v919
        %vm927 = vmor %vm925, %vm926
        %v928 = vsel %vm927, %v919, %v924
        %v929 = vrsqrt.pop %v912
        %v930 = vmul.f32 %v929, %v912
        %v931 = vmul.f32 %v930, %v929
        %v932 = vmul.f32 0.5, %v931
        %v933 = vsub.f32 1.5, %v932
        %v934 = vmul.f32 %v929, %v933
        %vm935 = vweird.f32 %v912
        %vm936 = vweird.f32 %v929
        %vm937 = vmor %vm935, %vm936
        %v938 = vsel %vm937, %v929, %v934
        %v939 = vrsqrt.pop %v913
        %v940 = vmul.f32 %v939, %v913
        %v941 = vmul.f32 %v940, %v939
        %v942 = vmul.f32 0.5, %v941
        %v943 = vsub.f32 1.5, %v942
        %v944 = vmul.f32 %v939, %v943
        %vm945 = vweird.f32 %v913
        %vm946 = vweird.f32 %v939
        %vm947 = vmor %vm945, %vm946
        %v948 = vsel %vm947, %v939, %v944
        %v949 = vrsqrt.pop %v914
        %v950 = vmul.f32 %v949, %v914
        %v951 = vmul.f32 %v950, %v949
        %v952 = vmul.f32 0.5, %v951
        %v953 = vsub.f32 1.5, %v952
        %v954 = vmul.f32 %v949, %v953
        %vm955 = vweird.f32 %v914
        %vm956 = vweird.f32 %v949
        %vm957 = vmor %vm955, %vm956
        %v958 = vsel %vm957, %v949, %v954
        %v959 = vrsqrt.pop %v915
        %v960 = vmul.f32 %v959, %v915
        %v961 = vmul.f32 %v960, %v959
        %v962 = vmul.f32 0.5, %v961
        %v963 = vsub.f32 1.5, %v962
        %v964 = vmul.f32 %v959, %v963
        %vm965 = vweird.f32 %v915
        %vm966 = vweird.f32 %v959
        %vm967 = vmor %vm965, %vm966
        %v968 = vsel %vm967, %v959, %v964
        %v969 = vrsqrt.pop %v916
        %v970 = vmul.f32 %v969, %v916
        %v971 = vmul.f32 %v970, %v969
        %v972 = vmul.f32 0.5, %v971
        %v973 = vsub.f32 1.5, %v972
        %v974 = vmul.f32 %v969, %v973
        %vm975 = vweird.f32 %v916
        %vm976 = vweird.f32 %v969
        %vm977 = vmor %vm975, %vm976
        %v978 = vsel %vm977, %v969, %v974
        %v979 = vrsqrt.pop %v917
        %v980 = vmul.f32 %v979, %v917
        %v981 = vmul.f32 %v980, %v979
        %v982 = vmul.f32 0.5, %v981
        %v983 = vsub.f32 1.5, %v982
        %v984 = vmul.f32 %v979, %v983
        %vm985 = vweird.f32 %v917
        %vm986 = vweird.f32 %v979
        %vm987 = vmor %vm985, %vm986
        %v988 = vsel %vm987, %v979, %v984
        %v989 = vrsqrt.pop %v918
        %v990 = vmul.f32 %v989, %v918
        %v991 = vmul.f32 %v990, %v989
        %v992 = vmul.f32 0.5, %v991
        %v993 = vsub.f32 1.5, %v992
        %v994 = vmul.f32 %v989, %v993
        %vm995 = vweird.f32 %v918
        %vm996 = vweird.f32 %v989
        %vm997 = vmor %vm995, %vm996
        %v998 = vsel %vm997, %v989, %v994
        %v999 = vmul.f32 %v903, %v928
        %v1000 = vmul.f32 %v904, %v938
        %v1001 = vmul.f32 %v905, %v948
        %v1002 = vmul.f32 %v906, %v958
        %v1003 = vmul.f32 %v907, %v968
        %v1004 = vmul.f32 %v908, %v978
        %v1005 = vmul.f32 %v909, %v988
        %v1006 = vmul.f32 %v910, %v998
        %v1008 = vperm.slane %v821, 0
        %v1010 = vmul.f32 %v999, %v1008
        %v1011 = vmul.f32 %v1000, %v1008
        %v1012 = vmul.f32 %v1001, %v1008
        %v1013 = vmul.f32 %v1002, %v1008
        %v1014 = vmul.f32 %v1003, %v1008
        %v1015 = vmul.f32 %v1004, %v1008
        %v1016 = vmul.f32 %v1005, %v1008
        %v1017 = vmul.f32 %v1006, %v1008
        %v1019 = vperm.slane %v822, 0
        %v1021 = vadd.f32 %v1010, %v1019
        %v1022 = vadd.f32 %v1011, %v1019
        %v1023 = vadd.f32 %v1012, %v1019
        %v1024 = vadd.f32 %v1013, %v1019
        %v1025 = vadd.f32 %v1014, %v1019
        %v1026 = vadd.f32 %v1015, %v1019
        %v1027 = vadd.f32 %v1016, %v1019
        %v1028 = vadd.f32 %v1017, %v1019
        %v1029 = vmul.f32 %v1021, 0.5
        %v1030 = vmul.f32 %v1022, 0.5
        %v1031 = vmul.f32 %v1023, 0.5
        %v1032 = vmul.f32 %v1024, 0.5
        %v1033 = vmul.f32 %v1025, 0.5
        %v1034 = vmul.f32 %v1026, 0.5
        %v1035 = vmul.f32 %v1027, 0.5
        %v1036 = vmul.f32 %v1028, 0.5
        %v1037 = vtanh.pop %v1029
        %v1038 = vtanh.pop %v1030
        %v1039 = vtanh.pop %v1031
        %v1040 = vtanh.pop %v1032
        %v1041 = vtanh.pop %v1033
        %v1042 = vtanh.pop %v1034
        %v1043 = vtanh.pop %v1035
        %v1044 = vtanh.pop %v1036
        %v1045 = vadd.f32 %v1037, 1.0
        %v1046 = vadd.f32 %v1038, 1.0
        %v1047 = vadd.f32 %v1039, 1.0
        %v1048 = vadd.f32 %v1040, 1.0
        %v1049 = vadd.f32 %v1041, 1.0
        %v1050 = vadd.f32 %v1042, 1.0
        %v1051 = vadd.f32 %v1043, 1.0
        %v1052 = vadd.f32 %v1044, 1.0
        %v1053 = vmul.f32 %v1045, 0.5
        %v1054 = vmul.f32 %v1046, 0.5
        %v1055 = vmul.f32 %v1047, 0.5
        %v1056 = vmul.f32 %v1048, 0.5
        %v1057 = vmul.f32 %v1049, 0.5
        %v1058 = vmul.f32 %v1050, 0.5
        %v1059 = vmul.f32 %v1051, 0.5
        %v1060 = vmul.f32 %v1052, 0.5
        %v1061 = vmul.f32 %v1021, %v1053
        %v1062 = vmul.f32 %v1022, %v1054
        %v1063 = vmul.f32 %v1023, %v1055
        %v1064 = vmul.f32 %v1024, %v1056
        %v1065 = vmul.f32 %v1025, %v1057
        %v1066 = vmul.f32 %v1026, %v1058
        %v1067 = vmul.f32 %v1027, %v1059
        %v1068 = vmul.f32 %v1028, %v1060
        %v1069 = vld [vmem:[#allocation2] sm:$0xff]
        %v1070 = vld [vmem:[#allocation2 + $0x8] sm:$0xff]
        %v1071 = vld [vmem:[#allocation2 + $0x10] sm:$0xff]
        %v1072 = vld [vmem:[#allocation2 + $0x18] sm:$0xff]
        %v1073 = vld [vmem:[#allocation2 + $0x20] sm:$0xff]
        %v1074 = vld [vmem:[#allocation2 + $0x28] sm:$0xff]
        %v1075 = vld [vmem:[#allocation2 + $0x30] sm:$0xff]
        %v1076 = vld [vmem:[#allocation2 + $0x38] sm:$0xff]
        %v1077 = vld [vmem:[#allocation2 + $0x40] sm:$0xff]
        %v1078 = vld [vmem:[#allocation2 + $0x48] sm:$0xff]
        %v1079 = vld [vmem:[#allocation2 + $0x50] sm:$0xff]
        %v1080 = vld [vmem:[#allocation2 + $0x58] sm:$0xff]
        %v1081 = vld [vmem:[#allocation2 + $0x60] sm:$0xff]
        %v1082 = vld [vmem:[#allocation2 + $0x68] sm:$0xff]
        %v1083 = vld [vmem:[#allocation2 + $0x70] sm:$0xff]
        %v1084 = vld [vmem:[#allocation2 + $0x78] sm:$0xff]
        %v1085 = vld [vmem:[%s10] sm:$0x1]
        %v1087 = vperm.slane %v1085, 0
        %1089 = vmatpush.msra.mxu0 %v1084
        %1090 = vmatpush.msra.mxu0 %v1083
        %1091 = vmatpush.msra.mxu0 %v1082
        %1092 = vmatpush.msra.mxu0 %v1081
        %1093 = vmatpush.msra.mxu0 %v1080
        %1094 = vmatpush.msra.mxu0 %v1079
        %1095 = vmatpush.msra.mxu0 %v1078
        %1096 = vmatpush.msra.mxu0 %v1077
        %1097 = vmatpush.msra.mxu0 %v1076
        %1098 = vmatpush.msra.mxu0 %v1075
        %1099 = vmatpush.msra.mxu0 %v1074
        %1100 = vmatpush.msra.mxu0 %v1073
        %1101 = vmatpush.msra.mxu0 %v1072
        %1102 = vmatpush.msra.mxu0 %v1071
        %1103 = vmatpush.msra.mxu0 %v1070
        %1104 = vmatpush.msra.mxu0 %v1069
        %1105 = vmatmul.f32.gmra.mxu0 %v1061
        %v1106 = vpop.f32.mrf.mxu0
        %v1107 = vadd.f32 %v1087, %v1106
        %1108 = vmatmul.f32.gmra.mxu0 %v1062
        %v1109 = vpop.f32.mrf.mxu0
        %v1110 = vadd.f32 %v1087, %v1109
        %1111 = vmatmul.f32.gmra.mxu0 %v1063
        %v1112 = vpop.f32.mrf.mxu0
        %v1113 = vadd.f32 %v1087, %v1112
        %1114 = vmatmul.f32.gmra.mxu0 %v1064
        %v1115 = vpop.f32.mrf.mxu0
        %v1116 = vadd.f32 %v1087, %v1115
        %1117 = vmatmul.f32.gmra.mxu0 %v1065
        %v1118 = vpop.f32.mrf.mxu0
        %v1119 = vadd.f32 %v1087, %v1118
        %1120 = vmatmul.f32.gmra.mxu0 %v1066
        %v1121 = vpop.f32.mrf.mxu0
        %v1122 = vadd.f32 %v1087, %v1121
        %1123 = vmatmul.f32.gmra.mxu0 %v1067
        %v1124 = vpop.f32.mrf.mxu0
        %v1125 = vadd.f32 %v1087, %v1124
        %1126 = vmatmul.f32.gmra.mxu0 %v1068
        %v1127 = vpop.f32.mrf.mxu0
        %v1128 = vadd.f32 %v1087, %v1127
        %1129 = vdwg.mxu0
        %1130 = vst [vmem:[%s409] sm:$0xff] %v1107
        %1131 = vst [vmem:[%s409 + $0x8] sm:$0xff] %v1110
        %1132 = vst [vmem:[%s409 + $0x10] sm:$0xff] %v1113
        %1133 = vst [vmem:[%s409 + $0x18] sm:$0xff] %v1116
        %1134 = vst [vmem:[%s409 + $0x20] sm:$0xff] %v1119
        %1135 = vst [vmem:[%s409 + $0x28] sm:$0xff] %v1122
        %1136 = vst [vmem:[%s409 + $0x30] sm:$0xff] %v1125
        %1137 = vst [vmem:[%s409 + $0x38] sm:$0xff] %v1128
        %s1138 = sand.u32 %s270, 1
        %s1139 = scalar_lea.sflag [#allocation4], %s1138
        %s1140 = sand.u32 %s270, 1
        %s1141 = smul.addr %s1140, 64
        %s1142 = scalar_lea.vmem [#allocation5], %s1141
        // Predicated region
        $region69: #{tpu_custom_call.1} parent=63 // pred_check
          %p1143 = pneg %p280
        $region70: #{tpu_custom_call.1} parent=63 // pred_check_branch
          %1145 = sbr.rel (%p1143) target = $region72
        $region71: #{tpu_custom_call.1} parent=63 // pred_region
          %s1146 = smul.u32 8, %s26
          %s1147 = ssub.s32 25, %s1146
          %p1148 = scmp.lt.s32.totalorder %s1147, 8
          %s1149 = scalar_select %p1148, %s1147, 8
          %s1150 = smul.u32 8, %s1149
          %s1151 = ssub.s32 64, %s1150
          %s1152 = sshll.u32 %s1151, 4
          %1153 = vsyncadd %s1139, %s1152
          %p1154 = scmp.ne.s32.totalorder 0, %s1150
          %s1155 = smul.addr %s1146, 8
          %s1156 = scalar_lea.hbm %s11, %s1155
          %s1157 = smul.u32 8, %s1149
          %s1158 = sshll.u32 %s1142, 4
          %s1159 = int_to_ptr.vmem [resolvable:$true] %s1158
          %s1160 = sshll.u32 %s1156, 4
          %s1161 = int_to_ptr.hbm [resolvable:$true] %s1160
          %s1162 = sshll.u32 %s1157, 4
          %1166 = dma.vmem_to_hbm [thread:$0]  (%p1154), %s1159, %s1162, %s1161, %s1139, 128, 128, 8
        $region72: #{tpu_custom_call.1} parent=63 // pred_fallthru
          _
      $region64: #{tpu_custom_call.1} parent=5 // pred_fallthru
        _
      %p1167 = scmp.le.s32.totalorder 2, %s21
      // Predicated region
      $region73: #{tpu_custom_call.1} parent=5 // pred_check
        %p1168 = pneg %p1167
      $region74: #{tpu_custom_call.1} parent=5 // pred_check_branch
        %1170 = sbr.rel (%p1168) target = $region76
      $region75: #{tpu_custom_call.1} parent=5 // pred_region
        %s1171 = ssub.s32 %s21, 2
        // Predicated region
        $region77: #{tpu_custom_call.1} parent=75 // pred_check
          %p1172 = pneg %p286
        $region78: #{tpu_custom_call.1} parent=75 // pred_check_branch
          %1174 = sbr.rel (%p1172) target = $region80
        $region79: #{tpu_custom_call.1} parent=75 // pred_region
          %s1175 = sand.u32 %s271, 1
          %s1176 = scalar_lea.sflag [#allocation4], %s1175
          %s1177 = sand.u32 %s271, 1
          %s1178 = smul.addr %s1177, 64
          %s1179 = scalar_lea.vmem [#allocation5], %s1178
          %1181 = dma.done %s1176, 1024
        $region80: #{tpu_custom_call.1} parent=75 // pred_fallthru
          _
      $region76: #{tpu_custom_call.1} parent=5 // pred_fallthru
        _
    $region6: #{tpu_custom_call.1} parent=1 // loop_footer
      %s25 = sadd.s32 1, %s21
    $region7: #{tpu_custom_call.1} parent=1 // loop_footer_branch
      %20 = sbr.rel target = $region3
    $region8: #{tpu_custom_call.1} parent=1 // loop_exit
      _
    %1182 = vsyncpa [#allocation3], 1
    %s1183 = scalar_lea.sflag [#allocation3], 1
    %1184 = vsyncpa %s1183, 1
    %1185 = vsyncpa [#allocation4], 1
    %s1186 = scalar_lea.sflag [#allocation4], 1
    %1187 = vsyncpa %s1186, 1

</llo_original>
